<compile_context>
chip_gen: v6e
topology: v6e:2x2x1
jax: 0.10.0
libtpu: 0.0.40
codegen_flags: <defaults>
</compile_context>

<pallas_src>
import jax
import jax.numpy as jnp
from jax.experimental import pallas as pl
from jax.experimental.pallas import tpu as pltpu

EPS = 1e-5
_MIB = 1024 * 1024


def _round_up(x, m):
    return ((x + m - 1) // m) * m


def _cdiv(a, b):
    return (a + b - 1) // b


# ----------------------------------------------------------------------------
# Kernel
# ----------------------------------------------------------------------------
def _make_kernel(c_real, c_pad, matmul_dtype):
    """Build the fused transition kernel closed over static sizes / dtypes."""
    needs_mask = c_real != c_pad
    inv_n = 1.0 / float(c_real)

    def kernel(x_ref, vec_ref, w1_ref, w2_ref, w3_ref, o_ref):
        x = x_ref[...].astype(jnp.float32)

        # Packed parameter-vector table (8, c_pad) f32:
        # rows: [g1, be1, b1, b2, b3, g2, be2, <unused>]
        vec = vec_ref[...]
        g1, be1 = vec[0:1, :], vec[1:2, :]
        b1, b2, b3 = vec[2:3, :], vec[3:4, :], vec[4:5, :]
        g2, be2 = vec[5:6, :], vec[6:7, :]

        if needs_mask:
            col = jax.lax.broadcasted_iota(jnp.int32, (1, c_pad), 1)
            mask = (col < c_real).astype(jnp.float32)
        else:
            mask = None

        def layernorm(v, gamma, beta):
            # f32 LayerNorm over the real c channels (padded lanes masked out).
            if mask is None:
                mean = jnp.mean(v, axis=-1, keepdims=True)
                vc = v - mean
                var = jnp.mean(vc * vc, axis=-1, keepdims=True)
            else:
                mean = jnp.sum(v * mask, axis=-1, keepdims=True) * inv_n
                vc = (v - mean) * mask
                var = jnp.sum(vc * vc, axis=-1, keepdims=True) * inv_n
            return vc * jax.lax.rsqrt(var + EPS) * gamma + beta

        # norm1
        h = layernorm(x, g1, be1)

        # linear1 + relu   (bf16 MXU inputs, f32 accumulation)
        h = jnp.dot(h.astype(matmul_dtype), w1_ref[...],
                    preferred_element_type=jnp.float32) + b1
        h = jnp.maximum(h, 0.0)

        # linear2 + relu
        h = jnp.dot(h.astype(matmul_dtype), w2_ref[...],
                    preferred_element_type=jnp.float32) + b2
        h = jnp.maximum(h, 0.0)

        # linear3
        h = jnp.dot(h.astype(matmul_dtype), w3_ref[...],
                    preferred_element_type=jnp.float32) + b3

        # residual + norm2 (padded lanes stay exactly zero -> sliced off outside)
        s_out = x + h
        o_ref[...] = layernorm(s_out, g2, be2).astype(o_ref.dtype)

    return kernel


# ----------------------------------------------------------------------------
# One-time parameter preparation (hoisted out of the per-call hot path)
# ----------------------------------------------------------------------------
def prepare_params(params, *, matmul_dtype=jnp.bfloat16):
    """Pad weights to lane-dense c_pad and cast to the MXU dtype, once."""
    c = int(params["w1"].shape[0])
    c_pad = _round_up(c, 128)
    dc = c_pad - c

    def pad_mat(w):
        w = jnp.asarray(w, jnp.float32)
        if dc:
            w = jnp.pad(w, ((0, dc), (0, dc)))
        return w.astype(matmul_dtype)

    def row(v):
        v = jnp.asarray(v, jnp.float32).reshape(1, -1)
        if dc:
            v = jnp.pad(v, ((0, 0), (0, dc)))
        return v

    vec = jnp.concatenate([
        row(params["g1"]), row(params["be1"]),
        row(params["b1"]), row(params["b2"]), row(params["b3"]),
        row(params["g2"]), row(params["be2"]),
        jnp.zeros((1, c_pad), jnp.float32),      # pad to 8 sublanes
    ], axis=0)                                   # (8, c_pad) f32

    return {
        "c": c,
        "c_pad": c_pad,
        "matmul_dtype": matmul_dtype,
        "vec": vec,
        "w1": pad_mat(params["w1"]),
        "w2": pad_mat(params["w2"]),
        "w3": pad_mat(params["w3"]),
    }


# ----------------------------------------------------------------------------
# Generation-aware VMEM budget and tile choice
# ----------------------------------------------------------------------------
def _vmem_limit_bytes():
    try:
        phys = int(pltpu.get_tpu_info().vmem_capacity_bytes)
    except Exception:
        return 48 * _MIB                       # safe on v5e / v6e / v7x
    # Leave ~12 MiB headroom for Mosaic internal scratch / spill slabs;
    # cap below the 128 MiB parts' physical size.
    return int(min(phys - 12 * _MIB, 112 * _MIB))


def _choose_tile(rows, c_pad, weight_bytes, vmem_limit, tile_rows_cap):
    # Per-row VMEM (f32): x in (2 bufs) + out (2 bufs) + ~2 live f32 temps.
    per_row = 6 * c_pad * 4
    avail = vmem_limit - weight_bytes - 2 * _MIB          # vec table + slack
    max_tile = max(8, (max(avail, 0) // per_row) // 8 * 8)
    max_tile = max(8, min(max_tile, _round_up(int(tile_rows_cap), 8)))
    # >= 2 grid steps so both v7x TensorCores get work; cdiv-based tile keeps
    # the ragged tail small. (On v6e/v7x multiples of 256 fill MXU M-passes,
    # but minimizing dead rows wins in the mem-bound small-c regime.)
    nblocks = max(2 if rows > 8 else 1, _cdiv(rows, max_tile))
    tile = min(max_tile, _round_up(_cdiv(rows, nblocks), 8))
    return tile, _cdiv(rows, tile)


# ----------------------------------------------------------------------------
# Wrapper
# ----------------------------------------------------------------------------
def transition_module(s, prepared, *, tile_rows=1024, vmem_limit_bytes=None):
    """s: (..., c) float32.  prepared: output of prepare_params()."""
    c, c_pad = prepared["c"], prepared["c_pad"]
    assert s.shape[-1] == c, f"expected last dim {c}, got {s.shape[-1]}"
    mm_dtype = prepared["matmul_dtype"]

    orig_shape = s.shape
    x = s.reshape(-1, c)
    rows = x.shape[0]

    channel_pad = c_pad != c
    if channel_pad:
        # Lane-densify channels (fast path skips this entirely when c % 128 == 0).
        x = jnp.pad(x, ((0, 0), (0, c_pad - c)))
    # No row padding: grid = cdiv(rows, tile); last block is ragged. Per-row
    # LayerNorm means stale rows in the ragged tail can't contaminate valid
    # rows, and Pallas drops out-of-bounds writes.

    if vmem_limit_bytes is None:
        vmem_limit_bytes = _vmem_limit_bytes()

    wbytes = sum(int(prepared[k].size) * prepared[k].dtype.itemsize
                 for k in ("w1", "w2", "w3"))
    # TODO(synk): for very large c (3*c_pad^2 resident weight bytes approaching
    # the VMEM budget, c_pad >~ 3072 bf16 on v7x) switch to a K/N-tiled
    # accumulator variant instead of keeping all three weights resident.
    tile, num_blocks = _choose_tile(rows, c_pad, wbytes,
                                    vmem_limit_bytes, tile_rows)

    kernel = _make_kernel(c, c_pad, mm_dtype)

    cost = pl.CostEstimate(
        flops=int(6 * rows * c * c),                       # 3 matmuls, 2 flops/MAC
        transcendentals=int(2 * rows),                     # 2 rsqrt per row
        bytes_accessed=int(2 * rows * c_pad * 4 + wbytes + 8 * c_pad * 4),
    )

    row_tile = pl.BlockSpec((tile, c_pad), lambda i: (i, 0))

    def build_call(single_buffer_resident):
        resident_kw = ({"pipeline_mode": pl.Buffered(1)}
                       if single_buffer_resident else {})
        full_mat = pl.BlockSpec((c_pad, c_pad), lambda i: (0, 0), **resident_kw)
        vec_spec = pl.BlockSpec((8, c_pad), lambda i: (0, 0), **resident_kw)
        return pl.pallas_call(
            kernel,
            out_shape=jax.ShapeDtypeStruct((rows, c_pad), s.dtype),
            grid_spec=pltpu.PrefetchScalarGridSpec(
                num_scalar_prefetch=0,
                grid=(num_blocks,),
                in_specs=[
                    row_tile,            # x
                    vec_spec,            # packed [g1,be1,b1,b2,b3,g2,be2] table
                    full_mat,            # W1
                    full_mat,            # W2
                    full_mat,            # W3
                ],
                out_specs=row_tile,
            ),
            compiler_params=pltpu.CompilerParams(
                dimension_semantics=("parallel",),
                vmem_limit_bytes=int(vmem_limit_bytes)),
            cost_estimate=cost,
        )

    args = (x, prepared["vec"], prepared["w1"], prepared["w2"], prepared["w3"])
    try:
        out = build_call(True)(*args)
    except Exception:
        # Fallback if this jax version rejects single-buffered pipeline_mode.
        out = build_call(False)(*args)

    if channel_pad:
        out = out[:, :c]
    return out.reshape(orig_shape)


# ----------------------------------------------------------------------------
# Synthetic params + pure-JAX reference
# ----------------------------------------------------------------------------
def make_params(c, key):
    """Deterministic synthetic parameters.

    LayerNorm: gamma=1, beta=0 (PyTorch default init).
    Linear: W stored as (c_in, c_out) so the kernel computes x @ W + b
    (equivalent to PyTorch's x @ weight.T + bias with weight = W.T).
    """
    k1, k2, k3, k4, k5, k6 = jax.random.split(key, 6)
    scale = 1.0 / jnp.sqrt(c)
    return {
        "g1": jnp.ones((1, c), jnp.float32),
        "be1": jnp.zeros((1, c), jnp.float32),
        "w1": jax.random.uniform(k1, (c, c), jnp.float32, -scale, scale),
        "b1": jax.random.uniform(k2, (1, c), jnp.float32, -scale, scale),
        "w2": jax.random.uniform(k3, (c, c), jnp.float32, -scale, scale),
        "b2": jax.random.uniform(k4, (1, c), jnp.float32, -scale, scale),
        "w3": jax.random.uniform(k5, (c, c), jnp.float32, -scale, scale),
        "b3": jax.random.uniform(k6, (1, c), jnp.float32, -scale, scale),
        "g2": jnp.ones((1, c), jnp.float32),
        "be2": jnp.zeros((1, c), jnp.float32),
    }


def transition_ref(s, p):
    """Pure-JAX f32 reference for validation."""
    def ln(x, g, b):
        m = jnp.mean(x, axis=-1, keepdims=True)
        v = jnp.mean((x - m) ** 2, axis=-1, keepdims=True)
        return (x - m) * jax.lax.rsqrt(v + EPS) * g + b
    h = ln(s, p["g1"], p["be1"])
    h = jax.nn.relu(h @ p["w1"] + p["b1"])
    h = jax.nn.relu(h @ p["w2"] + p["b2"])
    h = h @ p["w3"] + p["b3"]
    return ln(s + h, p["g2"], p["be2"])


if __name__ == "__main__":
    key = jax.random.PRNGKey(0)
    kx, kx2, kx3, kp = jax.random.split(key, 4)

    batch, seq, c = 2, 8, 32
    params = make_params(c, kp)

    # --- small shape, f32 matmul path (tight tolerance) ---
    s = jax.random.normal(kx, (batch, seq, c), jnp.float32)
    prep_f32 = prepare_params(params, matmul_dtype=jnp.float32)
    out_f32 = jax.block_until_ready(transition_module(s, prep_f32))
    ref = transition_ref(s, params)
    assert out_f32.shape == s.shape
    assert jnp.allclose(out_f32, ref, atol=1e-4, rtol=1e-4), \
        f"f32 path max err {jnp.max(jnp.abs(out_f32 - ref))}"

    # --- ragged row count (last block partially out of bounds), f32 path ---
    s3 = jax.random.normal(kx3, (3, 50, c), jnp.float32)   # rows=150 -> ragged
    out_rag = jax.block_until_ready(transition_module(s3, prep_f32))
    ref3 = transition_ref(s3, params)
    assert out_rag.shape == s3.shape
    assert jnp.allclose(out_rag, ref3, atol=1e-4, rtol=1e-4), \
        f"ragged path max err {jnp.max(jnp.abs(out_rag - ref3))}"

    # --- larger rows (multi-block grid), bf16 MXU path ---
    batch2, seq2 = 4, 96   # rows=384 -> 2 blocks of 192, no dead rows
    s2 = jax.random.normal(kx2, (batch2, seq2, c), jnp.float32)
    prep_bf16 = prepare_params(params, matmul_dtype=jnp.bfloat16)
    out_bf16 = jax.block_until_ready(transition_module(s2, prep_bf16))
    ref2 = transition_ref(s2, params)
    assert out_bf16.shape == s2.shape
    # bf16 MXU inputs with f32 accumulation -> loosened tolerance.
    assert jnp.allclose(out_bf16, ref2, atol=5e-2, rtol=5e-2), \
        f"bf16 path max err {jnp.max(jnp.abs(out_bf16 - ref2))}"

    print("KERNEL_OK")
</pallas_src>

<mosaic_0001>
module attributes {stable_mosaic.version = 11 : i64} {
  func.func @kernel(%arg0: i32, %arg1: memref<8x128xf32, #tpu.memory_space<vmem>>, %arg2: memref<8x128xf32, #tpu.memory_space<vmem>>, %arg3: memref<128x128xf32, #tpu.memory_space<vmem>>, %arg4: memref<128x128xf32, #tpu.memory_space<vmem>>, %arg5: memref<128x128xf32, #tpu.memory_space<vmem>>, %arg6: memref<8x128xf32, #tpu.memory_space<vmem>>) attributes {dimension_semantics = [#tpu.dimension_semantics<parallel>], iteration_bounds = array<i64: 2>, scalar_prefetch = 0 : i64, scratch_operands = 0 : i64, tpu.core_type = #tpu.core_type<tc>, window_params = [{transform_indices = @transform_0, window_bounds = array<i64: 8, 128>}, {pipeline_mode = #tpu.pipeline_mode<synchronous>, transform_indices = @transform_1, window_bounds = array<i64: 8, 128>}, {pipeline_mode = #tpu.pipeline_mode<synchronous>, transform_indices = @transform_2, window_bounds = array<i64: 128, 128>}, {pipeline_mode = #tpu.pipeline_mode<synchronous>, transform_indices = @transform_3, window_bounds = array<i64: 128, 128>}, {pipeline_mode = #tpu.pipeline_mode<synchronous>, transform_indices = @transform_4, window_bounds = array<i64: 128, 128>}, {transform_indices = @transform_5, window_bounds = array<i64: 8, 128>}]} {
    %c0 = arith.constant 0 : index
    %c0_0 = arith.constant 0 : index
    %0 = vector.load %arg1[%c0, %c0_0] : memref<8x128xf32, #tpu.memory_space<vmem>>, vector<8x128xf32>
    %c0_1 = arith.constant 0 : index
    %c0_2 = arith.constant 0 : index
    %1 = vector.load %arg2[%c0_1, %c0_2] : memref<8x128xf32, #tpu.memory_space<vmem>>, vector<8x128xf32>
    %2 = vector.extract_strided_slice %1 {offsets = [0, 0], sizes = [1, 128], strides = [1, 1]} : vector<8x128xf32> to vector<1x128xf32>
    %3 = vector.extract_strided_slice %1 {offsets = [1, 0], sizes = [1, 128], strides = [1, 1]} : vector<8x128xf32> to vector<1x128xf32>
    %4 = vector.extract_strided_slice %1 {offsets = [2, 0], sizes = [1, 128], strides = [1, 1]} : vector<8x128xf32> to vector<1x128xf32>
    %5 = vector.extract_strided_slice %1 {offsets = [3, 0], sizes = [1, 128], strides = [1, 1]} : vector<8x128xf32> to vector<1x128xf32>
    %6 = vector.extract_strided_slice %1 {offsets = [4, 0], sizes = [1, 128], strides = [1, 1]} : vector<8x128xf32> to vector<1x128xf32>
    %7 = vector.extract_strided_slice %1 {offsets = [5, 0], sizes = [1, 128], strides = [1, 1]} : vector<8x128xf32> to vector<1x128xf32>
    %8 = vector.extract_strided_slice %1 {offsets = [6, 0], sizes = [1, 128], strides = [1, 1]} : vector<8x128xf32> to vector<1x128xf32>
    %9 = tpu.iota {dimensions = array<i32: 1>} : vector<1x128xi32>
    %c32_i32 = arith.constant 32 : i32
    %10 = vector.broadcast %c32_i32 : i32 to vector<1x128xi32>
    %11 = arith.cmpi slt, %9, %10 : vector<1x128xi32>
    %12 = arith.extui %11 : vector<1x128xi1> to vector<1x128xi32>
    %13 = arith.sitofp %12 : vector<1x128xi32> to vector<1x128xf32>
    %14 = vector.broadcast %13 : vector<1x128xf32> to vector<8x128xf32>
    %15 = arith.mulf %0, %14 : vector<8x128xf32>
    %cst = arith.constant dense<0.000000e+00> : vector<8xf32>
    %16 = vector.multi_reduction <add>, %15, %cst [1] : vector<8x128xf32> to vector<8xf32>
    %17 = vector.shape_cast %16 : vector<8xf32> to vector<8x1xf32>
    %cst_3 = arith.constant 3.125000e-02 : f32
    %18 = vector.broadcast %cst_3 : f32 to vector<8x1xf32>
    %19 = arith.mulf %17, %18 : vector<8x1xf32>
    %20 = vector.broadcast %19 : vector<8x1xf32> to vector<8x128xf32>
    %21 = arith.subf %0, %20 : vector<8x128xf32>
    %22 = vector.broadcast %13 : vector<1x128xf32> to vector<8x128xf32>
    %23 = arith.mulf %21, %22 : vector<8x128xf32>
    %24 = arith.mulf %23, %23 : vector<8x128xf32>
    %cst_4 = arith.constant dense<0.000000e+00> : vector<8xf32>
    %25 = vector.multi_reduction <add>, %24, %cst_4 [1] : vector<8x128xf32> to vector<8xf32>
    %26 = vector.shape_cast %25 : vector<8xf32> to vector<8x1xf32>
    %cst_5 = arith.constant 3.125000e-02 : f32
    %27 = vector.broadcast %cst_5 : f32 to vector<8x1xf32>
    %28 = arith.mulf %26, %27 : vector<8x1xf32>
    %cst_6 = arith.constant 9.99999974E-6 : f32
    %29 = vector.broadcast %cst_6 : f32 to vector<8x1xf32>
    %30 = arith.addf %28, %29 : vector<8x1xf32>
    %31 = math.rsqrt %30 : vector<8x1xf32>
    %32 = vector.broadcast %31 : vector<8x1xf32> to vector<8x128xf32>
    %33 = arith.mulf %23, %32 : vector<8x128xf32>
    %34 = vector.broadcast %2 : vector<1x128xf32> to vector<8x128xf32>
    %35 = arith.mulf %33, %34 : vector<8x128xf32>
    %36 = vector.broadcast %3 : vector<1x128xf32> to vector<8x128xf32>
    %37 = arith.addf %35, %36 : vector<8x128xf32>
    %c0_7 = arith.constant 0 : index
    %c0_8 = arith.constant 0 : index
    %38 = vector.load %arg3[%c0_7, %c0_8] : memref<128x128xf32, #tpu.memory_space<vmem>>, vector<128x128xf32>
    %cst_9 = arith.constant dense<0.000000e+00> : vector<8x128xf32>
    %39 = tpu.matmul %37, %38, %cst_9 {dimension_numbers = #tpu.dot_dimension_numbers<[1], [0], [0], [1], [0, 0, 1, 1], [], []>} : vector<8x128xf32>, vector<128x128xf32>, vector<8x128xf32> -> vector<8x128xf32>
    %40 = vector.broadcast %4 : vector<1x128xf32> to vector<8x128xf32>
    %41 = arith.addf %39, %40 : vector<8x128xf32>
    %cst_10 = arith.constant 0.000000e+00 : f32
    %42 = vector.broadcast %cst_10 : f32 to vector<8x128xf32>
    %43 = arith.maximumf %41, %42 : vector<8x128xf32>
    %c0_11 = arith.constant 0 : index
    %c0_12 = arith.constant 0 : index
    %44 = vector.load %arg4[%c0_11, %c0_12] : memref<128x128xf32, #tpu.memory_space<vmem>>, vector<128x128xf32>
    %cst_13 = arith.constant dense<0.000000e+00> : vector<8x128xf32>
    %45 = tpu.matmul %43, %44, %cst_13 {dimension_numbers = #tpu.dot_dimension_numbers<[1], [0], [0], [1], [0, 0, 1, 1], [], []>} : vector<8x128xf32>, vector<128x128xf32>, vector<8x128xf32> -> vector<8x128xf32>
    %46 = vector.broadcast %5 : vector<1x128xf32> to vector<8x128xf32>
    %47 = arith.addf %45, %46 : vector<8x128xf32>
    %cst_14 = arith.constant 0.000000e+00 : f32
    %48 = vector.broadcast %cst_14 : f32 to vector<8x128xf32>
    %49 = arith.maximumf %47, %48 : vector<8x128xf32>
    %c0_15 = arith.constant 0 : index
    %c0_16 = arith.constant 0 : index
    %50 = vector.load %arg5[%c0_15, %c0_16] : memref<128x128xf32, #tpu.memory_space<vmem>>, vector<128x128xf32>
    %cst_17 = arith.constant dense<0.000000e+00> : vector<8x128xf32>
    %51 = tpu.matmul %49, %50, %cst_17 {dimension_numbers = #tpu.dot_dimension_numbers<[1], [0], [0], [1], [0, 0, 1, 1], [], []>} : vector<8x128xf32>, vector<128x128xf32>, vector<8x128xf32> -> vector<8x128xf32>
    %52 = vector.broadcast %6 : vector<1x128xf32> to vector<8x128xf32>
    %53 = arith.addf %51, %52 : vector<8x128xf32>
    %54 = arith.addf %0, %53 : vector<8x128xf32>
    %55 = vector.broadcast %13 : vector<1x128xf32> to vector<8x128xf32>
    %56 = arith.mulf %54, %55 : vector<8x128xf32>
    %cst_18 = arith.constant dense<0.000000e+00> : vector<8xf32>
    %57 = vector.multi_reduction <add>, %56, %cst_18 [1] : vector<8x128xf32> to vector<8xf32>
    %58 = vector.shape_cast %57 : vector<8xf32> to vector<8x1xf32>
    %cst_19 = arith.constant 3.125000e-02 : f32
    %59 = vector.broadcast %cst_19 : f32 to vector<8x1xf32>
    %60 = arith.mulf %58, %59 : vector<8x1xf32>
    %61 = vector.broadcast %60 : vector<8x1xf32> to vector<8x128xf32>
    %62 = arith.subf %54, %61 : vector<8x128xf32>
    %63 = vector.broadcast %13 : vector<1x128xf32> to vector<8x128xf32>
    %64 = arith.mulf %62, %63 : vector<8x128xf32>
    %65 = arith.mulf %64, %64 : vector<8x128xf32>
    %cst_20 = arith.constant dense<0.000000e+00> : vector<8xf32>
    %66 = vector.multi_reduction <add>, %65, %cst_20 [1] : vector<8x128xf32> to vector<8xf32>
    %67 = vector.shape_cast %66 : vector<8xf32> to vector<8x1xf32>
    %cst_21 = arith.constant 3.125000e-02 : f32
    %68 = vector.broadcast %cst_21 : f32 to vector<8x1xf32>
    %69 = arith.mulf %67, %68 : vector<8x1xf32>
    %cst_22 = arith.constant 9.99999974E-6 : f32
    %70 = vector.broadcast %cst_22 : f32 to vector<8x1xf32>
    %71 = arith.addf %69, %70 : vector<8x1xf32>
    %72 = math.rsqrt %71 : vector<8x1xf32>
    %73 = vector.broadcast %72 : vector<8x1xf32> to vector<8x128xf32>
    %74 = arith.mulf %64, %73 : vector<8x128xf32>
    %75 = vector.broadcast %7 : vector<1x128xf32> to vector<8x128xf32>
    %76 = arith.mulf %74, %75 : vector<8x128xf32>
    %77 = vector.broadcast %8 : vector<1x128xf32> to vector<8x128xf32>
    %78 = arith.addf %76, %77 : vector<8x128xf32>
    %c0_23 = arith.constant 0 : index
    %c0_24 = arith.constant 0 : index
    %79 = vector.load %arg6[%c0_23, %c0_24] : memref<8x128xf32, #tpu.memory_space<vmem>>, vector<8x128xf32>
    tpu.vector_store %arg6[%c0_23, %c0_24], %78 {strides = array<i32>} : memref<8x128xf32, #tpu.memory_space<vmem>>, vector<8x128xf32>,
    return
  }
  func.func @transform_0(%arg0: i32) -> (i32, i32) {
    %c0_i32 = arith.constant 0 : i32
    %c0_i32_0 = arith.constant 0 : i32
    return %arg0, %c0_i32 : i32, i32
  }
  func.func @transform_1(%arg0: i32) -> (i32, i32) {
    %c0_i32 = arith.constant 0 : i32
    %c0_i32_0 = arith.constant 0 : i32
    %c0_i32_1 = arith.constant 0 : i32
    return %c0_i32, %c0_i32_0 : i32, i32
  }
  func.func @transform_2(%arg0: i32) -> (i32, i32) {
    %c0_i32 = arith.constant 0 : i32
    %c0_i32_0 = arith.constant 0 : i32
    %c0_i32_1 = arith.constant 0 : i32
    return %c0_i32, %c0_i32_0 : i32, i32
  }
  func.func @transform_3(%arg0: i32) -> (i32, i32) {
    %c0_i32 = arith.constant 0 : i32
    %c0_i32_0 = arith.constant 0 : i32
    %c0_i32_1 = arith.constant 0 : i32
    return %c0_i32, %c0_i32_0 : i32, i32
  }
  func.func @transform_4(%arg0: i32) -> (i32, i32) {
    %c0_i32 = arith.constant 0 : i32
    %c0_i32_0 = arith.constant 0 : i32
    %c0_i32_1 = arith.constant 0 : i32
    return %c0_i32, %c0_i32_0 : i32, i32
  }
  func.func @transform_5(%arg0: i32) -> (i32, i32) {
    %c0_i32 = arith.constant 0 : i32
    %c0_i32_0 = arith.constant 0 : i32
    return %arg0, %c0_i32 : i32, i32
  }
}

module attributes {stable_mosaic.version = 11 : i64} {
  func.func @kernel(%arg0: i32, %arg1: memref<8x128xf32, #tpu.memory_space<vmem>>, %arg2: memref<8x128xf32, #tpu.memory_space<vmem>>, %arg3: memref<128x128xf32, #tpu.memory_space<vmem>>, %arg4: memref<128x128xf32, #tpu.memory_space<vmem>>, %arg5: memref<128x128xf32, #tpu.memory_space<vmem>>, %arg6: memref<8x128xf32, #tpu.memory_space<vmem>>) attributes {dimension_semantics = [#tpu.dimension_semantics<parallel>], iteration_bounds = array<i64: 2>, scalar_prefetch = 0 : i64, scratch_operands = 0 : i64, tpu.core_type = #tpu.core_type<tc>, window_params = [{transform_indices = @transform_0, window_bounds = array<i64: 8, 128>}, {pipeline_mode = #tpu.pipeline_mode<synchronous>, transform_indices = @transform_1, window_bounds = array<i64: 8, 128>}, {pipeline_mode = #tpu.pipeline_mode<synchronous>, transform_indices = @transform_2, window_bounds = array<i64: 128, 128>}, {pipeline_mode = #tpu.pipeline_mode<synchronous>, transform_indices = @transform_3, window_bounds = array<i64: 128, 128>}, {pipeline_mode = #tpu.pipeline_mode<synchronous>, transform_indices = @transform_4, window_bounds = array<i64: 128, 128>}, {transform_indices = @transform_5, window_bounds = array<i64: 8, 128>}]} {
    %c0 = arith.constant 0 : index
    %c0_0 = arith.constant 0 : index
    %0 = vector.load %arg1[%c0, %c0_0] : memref<8x128xf32, #tpu.memory_space<vmem>>, vector<8x128xf32>
    %c0_1 = arith.constant 0 : index
    %c0_2 = arith.constant 0 : index
    %1 = vector.load %arg2[%c0_1, %c0_2] : memref<8x128xf32, #tpu.memory_space<vmem>>, vector<8x128xf32>
    %2 = vector.extract_strided_slice %1 {offsets = [0, 0], sizes = [1, 128], strides = [1, 1]} : vector<8x128xf32> to vector<1x128xf32>
    %3 = vector.extract_strided_slice %1 {offsets = [1, 0], sizes = [1, 128], strides = [1, 1]} : vector<8x128xf32> to vector<1x128xf32>
    %4 = vector.extract_strided_slice %1 {offsets = [2, 0], sizes = [1, 128], strides = [1, 1]} : vector<8x128xf32> to vector<1x128xf32>
    %5 = vector.extract_strided_slice %1 {offsets = [3, 0], sizes = [1, 128], strides = [1, 1]} : vector<8x128xf32> to vector<1x128xf32>
    %6 = vector.extract_strided_slice %1 {offsets = [4, 0], sizes = [1, 128], strides = [1, 1]} : vector<8x128xf32> to vector<1x128xf32>
    %7 = vector.extract_strided_slice %1 {offsets = [5, 0], sizes = [1, 128], strides = [1, 1]} : vector<8x128xf32> to vector<1x128xf32>
    %8 = vector.extract_strided_slice %1 {offsets = [6, 0], sizes = [1, 128], strides = [1, 1]} : vector<8x128xf32> to vector<1x128xf32>
    %9 = tpu.iota {dimensions = array<i32: 1>} : vector<1x128xi32>
    %c32_i32 = arith.constant 32 : i32
    %10 = vector.broadcast %c32_i32 : i32 to vector<1x128xi32>
    %11 = arith.cmpi slt, %9, %10 : vector<1x128xi32>
    %12 = arith.extui %11 : vector<1x128xi1> to vector<1x128xi32>
    %13 = arith.sitofp %12 : vector<1x128xi32> to vector<1x128xf32>
    %14 = vector.broadcast %13 : vector<1x128xf32> to vector<8x128xf32>
    %15 = arith.mulf %0, %14 : vector<8x128xf32>
    %cst = arith.constant dense<0.000000e+00> : vector<8xf32>
    %16 = vector.multi_reduction <add>, %15, %cst [1] : vector<8x128xf32> to vector<8xf32>
    %17 = vector.shape_cast %16 : vector<8xf32> to vector<8x1xf32>
    %cst_3 = arith.constant 3.125000e-02 : f32
    %18 = vector.broadcast %cst_3 : f32 to vector<8x1xf32>
    %19 = arith.mulf %17, %18 : vector<8x1xf32>
    %20 = vector.broadcast %19 : vector<8x1xf32> to vector<8x128xf32>
    %21 = arith.subf %0, %20 : vector<8x128xf32>
    %22 = vector.broadcast %13 : vector<1x128xf32> to vector<8x128xf32>
    %23 = arith.mulf %21, %22 : vector<8x128xf32>
    %24 = arith.mulf %23, %23 : vector<8x128xf32>
    %cst_4 = arith.constant dense<0.000000e+00> : vector<8xf32>
    %25 = vector.multi_reduction <add>, %24, %cst_4 [1] : vector<8x128xf32> to vector<8xf32>
    %26 = vector.shape_cast %25 : vector<8xf32> to vector<8x1xf32>
    %cst_5 = arith.constant 3.125000e-02 : f32
    %27 = vector.broadcast %cst_5 : f32 to vector<8x1xf32>
    %28 = arith.mulf %26, %27 : vector<8x1xf32>
    %cst_6 = arith.constant 9.99999974E-6 : f32
    %29 = vector.broadcast %cst_6 : f32 to vector<8x1xf32>
    %30 = arith.addf %28, %29 : vector<8x1xf32>
    %31 = math.rsqrt %30 : vector<8x1xf32>
    %32 = vector.broadcast %31 : vector<8x1xf32> to vector<8x128xf32>
    %33 = arith.mulf %23, %32 : vector<8x128xf32>
    %34 = vector.broadcast %2 : vector<1x128xf32> to vector<8x128xf32>
    %35 = arith.mulf %33, %34 : vector<8x128xf32>
    %36 = vector.broadcast %3 : vector<1x128xf32> to vector<8x128xf32>
    %37 = arith.addf %35, %36 : vector<8x128xf32>
    %c0_7 = arith.constant 0 : index
    %c0_8 = arith.constant 0 : index
    %38 = vector.load %arg3[%c0_7, %c0_8] : memref<128x128xf32, #tpu.memory_space<vmem>>, vector<128x128xf32>
    %cst_9 = arith.constant dense<0.000000e+00> : vector<8x128xf32>
    %39 = tpu.matmul %37, %38, %cst_9 {dimension_numbers = #tpu.dot_dimension_numbers<[1], [0], [0], [1], [0, 0, 1, 1], [], []>} : vector<8x128xf32>, vector<128x128xf32>, vector<8x128xf32> -> vector<8x128xf32>
    %40 = vector.broadcast %4 : vector<1x128xf32> to vector<8x128xf32>
    %41 = arith.addf %39, %40 : vector<8x128xf32>
    %cst_10 = arith.constant 0.000000e+00 : f32
    %42 = vector.broadcast %cst_10 : f32 to vector<8x128xf32>
    %43 = arith.maximumf %41, %42 : vector<8x128xf32>
    %c0_11 = arith.constant 0 : index
    %c0_12 = arith.constant 0 : index
    %44 = vector.load %arg4[%c0_11, %c0_12] : memref<128x128xf32, #tpu.memory_space<vmem>>, vector<128x128xf32>
    %cst_13 = arith.constant dense<0.000000e+00> : vector<8x128xf32>
    %45 = tpu.matmul %43, %44, %cst_13 {dimension_numbers = #tpu.dot_dimension_numbers<[1], [0], [0], [1], [0, 0, 1, 1], [], []>} : vector<8x128xf32>, vector<128x128xf32>, vector<8x128xf32> -> vector<8x128xf32>
    %46 = vector.broadcast %5 : vector<1x128xf32> to vector<8x128xf32>
    %47 = arith.addf %45, %46 : vector<8x128xf32>
    %cst_14 = arith.constant 0.000000e+00 : f32
    %48 = vector.broadcast %cst_14 : f32 to vector<8x128xf32>
    %49 = arith.maximumf %47, %48 : vector<8x128xf32>
    %c0_15 = arith.constant 0 : index
    %c0_16 = arith.constant 0 : index
    %50 = vector.load %arg5[%c0_15, %c0_16] : memref<128x128xf32, #tpu.memory_space<vmem>>, vector<128x128xf32>
    %cst_17 = arith.constant dense<0.000000e+00> : vector<8x128xf32>
    %51 = tpu.matmul %49, %50, %cst_17 {dimension_numbers = #tpu.dot_dimension_numbers<[1], [0], [0], [1], [0, 0, 1, 1], [], []>} : vector<8x128xf32>, vector<128x128xf32>, vector<8x128xf32> -> vector<8x128xf32>
    %52 = vector.broadcast %6 : vector<1x128xf32> to vector<8x128xf32>
    %53 = arith.addf %51, %52 : vector<8x128xf32>
    %54 = arith.addf %0, %53 : vector<8x128xf32>
    %55 = vector.broadcast %13 : vector<1x128xf32> to vector<8x128xf32>
    %56 = arith.mulf %54, %55 : vector<8x128xf32>
    %cst_18 = arith.constant dense<0.000000e+00> : vector<8xf32>
    %57 = vector.multi_reduction <add>, %56, %cst_18 [1] : vector<8x128xf32> to vector<8xf32>
    %58 = vector.shape_cast %57 : vector<8xf32> to vector<8x1xf32>
    %cst_19 = arith.constant 3.125000e-02 : f32
    %59 = vector.broadcast %cst_19 : f32 to vector<8x1xf32>
    %60 = arith.mulf %58, %59 : vector<8x1xf32>
    %61 = vector.broadcast %60 : vector<8x1xf32> to vector<8x128xf32>
    %62 = arith.subf %54, %61 : vector<8x128xf32>
    %63 = vector.broadcast %13 : vector<1x128xf32> to vector<8x128xf32>
    %64 = arith.mulf %62, %63 : vector<8x128xf32>
    %65 = arith.mulf %64, %64 : vector<8x128xf32>
    %cst_20 = arith.constant dense<0.000000e+00> : vector<8xf32>
    %66 = vector.multi_reduction <add>, %65, %cst_20 [1] : vector<8x128xf32> to vector<8xf32>
    %67 = vector.shape_cast %66 : vector<8xf32> to vector<8x1xf32>
    %cst_21 = arith.constant 3.125000e-02 : f32
    %68 = vector.broadcast %cst_21 : f32 to vector<8x1xf32>
    %69 = arith.mulf %67, %68 : vector<8x1xf32>
    %cst_22 = arith.constant 9.99999974E-6 : f32
    %70 = vector.broadcast %cst_22 : f32 to vector<8x1xf32>
    %71 = arith.addf %69, %70 : vector<8x1xf32>
    %72 = math.rsqrt %71 : vector<8x1xf32>
    %73 = vector.broadcast %72 : vector<8x1xf32> to vector<8x128xf32>
    %74 = arith.mulf %64, %73 : vector<8x128xf32>
    %75 = vector.broadcast %7 : vector<1x128xf32> to vector<8x128xf32>
    %76 = arith.mulf %74, %75 : vector<8x128xf32>
    %77 = vector.broadcast %8 : vector<1x128xf32> to vector<8x128xf32>
    %78 = arith.addf %76, %77 : vector<8x128xf32>
    %c0_23 = arith.constant 0 : index
    %c0_24 = arith.constant 0 : index
    %79 = vector.load %arg6[%c0_23, %c0_24] : memref<8x128xf32, #tpu.memory_space<vmem>>, vector<8x128xf32>
    tpu.vector_store %arg6[%c0_23, %c0_24], %78 {strides = array<i32>} : memref<8x128xf32, #tpu.memory_space<vmem>>, vector<8x128xf32>,
    return
  }
  func.func @transform_0(%arg0: i32) -> (i32, i32) {
    %c0_i32 = arith.constant 0 : i32
    %c0_i32_0 = arith.constant 0 : i32
    return %arg0, %c0_i32 : i32, i32
  }
  func.func @transform_1(%arg0: i32) -> (i32, i32) {
    %c0_i32 = arith.constant 0 : i32
    %c0_i32_0 = arith.constant 0 : i32
    %c0_i32_1 = arith.constant 0 : i32
    return %c0_i32, %c0_i32_0 : i32, i32
  }
  func.func @transform_2(%arg0: i32) -> (i32, i32) {
    %c0_i32 = arith.constant 0 : i32
    %c0_i32_0 = arith.constant 0 : i32
    %c0_i32_1 = arith.constant 0 : i32
    return %c0_i32, %c0_i32_0 : i32, i32
  }
  func.func @transform_3(%arg0: i32) -> (i32, i32) {
    %c0_i32 = arith.constant 0 : i32
    %c0_i32_0 = arith.constant 0 : i32
    %c0_i32_1 = arith.constant 0 : i32
    return %c0_i32, %c0_i32_0 : i32, i32
  }
  func.func @transform_4(%arg0: i32) -> (i32, i32) {
    %c0_i32 = arith.constant 0 : i32
    %c0_i32_0 = arith.constant 0 : i32
    %c0_i32_1 = arith.constant 0 : i32
    return %c0_i32, %c0_i32_0 : i32, i32
  }
  func.func @transform_5(%arg0: i32) -> (i32, i32) {
    %c0_i32 = arith.constant 0 : i32
    %c0_i32_0 = arith.constant 0 : i32
    return %arg0, %c0_i32 : i32, i32
  }
}

</mosaic_0001>

<llo_original>
// kernel: tpu_custom_call.1
$region0: #{tpu_custom_call.1}
  #allocation0 [shape = 'u32[]', space=smem, size = 0x4, offset = 0x4, fixed_abs, tag = 'smem constant byte address 0x4 - core index']
  #allocation1 [shape = 'u32[144,128]{1,0:T(1,128)}', space=vmem, size = 0x12000, scoped, tag = 'internal scratch']
  %s0 = inlined_call_operand.hbm [shape: f32[16,128], index: 0, kind: input, shape index: {}]
  %s1 = inlined_call_operand.hbm [shape: f32[8,128], index: 1, kind: input, shape index: {}]
  %s2 = inlined_call_operand.hbm [shape: f32[128,128], index: 2, kind: input, shape index: {}]
  %s3 = inlined_call_operand.hbm [shape: f32[128,128], index: 3, kind: input, shape index: {}]
  %s4 = inlined_call_operand.hbm [shape: f32[128,128], index: 4, kind: input, shape index: {}]
  %s5 = inlined_call_operand.hbm [shape: f32[16,128], index: 5, kind: output, shape index: {}]
  %s6 = sld [smem:[#allocation0]]
  $region73: #{tpu_custom_call.1} parent=0
    _
  %s8 = ssub.s32 1, %s6
  %s9 = scalar_select 0, %s8, %s6
  $region1: #{tpu_custom_call.1} parent=0
    #allocation2 [shape = 'u8[8192]{0}', space=vmem, size = 0x2000, scoped, tag = 'input window, operand 0']
    #allocation3 [shape = 's32[2]{0}', space=sflag, size = 0x8, scoped, tag = 'scoped memory for tpu_custom_call.1']
    #allocation4 [shape = 's32[2]{0}', space=sflag, size = 0x8, scoped, tag = 'scoped memory for tpu_custom_call.1']
    #allocation5 [shape = 'u8[4096]{0}', space=vmem, size = 0x1000, scoped, tag = 'input window, operand 1, single buffered']
    #allocation6 [shape = 's32[1]{0}', space=sflag, size = 0x4, scoped, tag = 'scoped memory for tpu_custom_call.1']
    #allocation7 [shape = 'u8[65536]{0}', space=vmem, size = 0x10000, scoped, tag = 'input window, operand 2, single buffered']
    #allocation8 [shape = 'u8[65536]{0}', space=vmem, size = 0x10000, scoped, tag = 'input window, operand 3, single buffered']
    #allocation9 [shape = 's32[1]{0}', space=sflag, size = 0x4, scoped, tag = 'scoped memory for tpu_custom_call.1']
    #allocation10 [shape = 'u8[65536]{0}', space=vmem, size = 0x10000, scoped, tag = 'input window, operand 4, single buffered']
    #allocation11 [shape = 'u8[8192]{0}', space=vmem, size = 0x2000, scoped, tag = 'output window, operand 0']
    %10 = vsyncpa [#allocation3], 0
    %s11 = scalar_lea.sflag [#allocation3], 1
    %12 = vsyncpa %s11, 0
    %13 = vsyncpa [#allocation6], 0
    %14 = vsyncpa [#allocation9], 0
    %15 = vsyncpa [#allocation4], 0
    %s16 = scalar_lea.sflag [#allocation4], 1
    %17 = vsyncpa %s16, 0
    loop: start=0, step=1, limit=4
    $region2: #{tpu_custom_call.1} parent=1 // loop_pre_header
      _
    $region3: #{tpu_custom_call.1} parent=1 // loop_header
      %s19 = sphi 0, %s23
      %p20 = scmp.ge.s32.totalorder %s19, 4
      %s29 = sphi 0, %s31
      %s32 = sphi 0, %s29
      %s33 = sphi 0, %s32
      %s49 = sphi 0, %s33
      %s53 = sphi 0, %s53
      %s55 = sphi 0, %s53
      %s56 = sphi 0, %s55
      %s70 = sphi 0, %s56
      %s74 = sphi 0, %s74
      %s76 = sphi 0, %s74
      %s77 = sphi 0, %s76
      %s91 = sphi 0, %s77
      %s95 = sphi 0, %s95
      %s97 = sphi 0, %s95
      %s98 = sphi 0, %s97
      %s112 = sphi 0, %s98
      %s116 = sphi 0, %s116
      %s118 = sphi 0, %s116
      %s119 = sphi 0, %s118
      %s133 = sphi 0, %s119
      %s139 = sphi 0, %s141
      %s142 = sphi 0, %s139
      %s143 = sphi 0, %s142
      %s159 = sphi 0, %s143
    $region4: #{tpu_custom_call.1} parent=1 // loop_header_branch
      %22 = sbr.rel (%p20) target = $region8
    $region5: #{tpu_custom_call.1} parent=1 // loop_body
      %s24 = ssub.s32 %s19, 1
      %s25 = ssub.s32 %s19, 2
      %s26 = sadd.s32 %s19, 1
      %s27 = ssub.s32 %s19, %s26
      %p28 = scmp.eq.s32.totalorder %s27, 0
      %s30 = sadd.s32 %s29, 1
      %s31 = scalar_select %p28, %s29, %s30
      %p34 = pneg %p28
      %p35 = scmp.eq.s32.totalorder %s19, 1
      %p36 = por %p34, %p35
      %p37 = scmp.ne.s32.totalorder %s29, %s32
      %p38 = scmp.eq.s32.totalorder %s19, 0
      %p39 = por %p37, %p38
      %p40 = scmp.ne.s32.totalorder %s29, %s32
      %p41 = scmp.eq.s32.totalorder %s24, 1
      %p42 = por %p40, %p41
      %p43 = scmp.ne.s32.totalorder %s32, %s33
      %p44 = scmp.eq.s32.totalorder %s24, 0
      %p45 = por %p43, %p44
      %p46 = scmp.ne.s32.totalorder %s32, %s33
      %p47 = scmp.eq.s32.totalorder %s25, 1
      %p48 = por %p46, %p47
      %p50 = scmp.ne.s32.totalorder %s33, %s49
      %p51 = scmp.eq.s32.totalorder %s25, 0
      %p52 = por %p50, %p51
      %s54 = sadd.s32 %s53, 1
      %p57 = scmp.eq.s32.totalorder %s19, 1
      %p58 = scmp.ne.s32.totalorder %s53, %s55
      %p59 = scmp.eq.s32.totalorder %s19, 0
      %p60 = por %p58, %p59
      %p61 = scmp.ne.s32.totalorder %s53, %s55
      %p62 = scmp.eq.s32.totalorder %s24, 1
      %p63 = por %p61, %p62
      %p64 = scmp.ne.s32.totalorder %s55, %s56
      %p65 = scmp.eq.s32.totalorder %s24, 0
      %p66 = por %p64, %p65
      %p67 = scmp.ne.s32.totalorder %s55, %s56
      %p68 = scmp.eq.s32.totalorder %s25, 1
      %p69 = por %p67, %p68
      %p71 = scmp.ne.s32.totalorder %s56, %s70
      %p72 = scmp.eq.s32.totalorder %s25, 0
      %p73 = por %p71, %p72
      %s75 = sadd.s32 %s74, 1
      %p78 = scmp.eq.s32.totalorder %s19, 1
      %p79 = scmp.ne.s32.totalorder %s74, %s76
      %p80 = scmp.eq.s32.totalorder %s19, 0
      %p81 = por %p79, %p80
      %p82 = scmp.ne.s32.totalorder %s74, %s76
      %p83 = scmp.eq.s32.totalorder %s24, 1
      %p84 = por %p82, %p83
      %p85 = scmp.ne.s32.totalorder %s76, %s77
      %p86 = scmp.eq.s32.totalorder %s24, 0
      %p87 = por %p85, %p86
      %p88 = scmp.ne.s32.totalorder %s76, %s77
      %p89 = scmp.eq.s32.totalorder %s25, 1
      %p90 = por %p88, %p89
      %p92 = scmp.ne.s32.totalorder %s77, %s91
      %p93 = scmp.eq.s32.totalorder %s25, 0
      %p94 = por %p92, %p93
      %s96 = sadd.s32 %s95, 1
      %p99 = scmp.eq.s32.totalorder %s19, 1
      %p100 = scmp.ne.s32.totalorder %s95, %s97
      %p101 = scmp.eq.s32.totalorder %s19, 0
      %p102 = por %p100, %p101
      %p103 = scmp.ne.s32.totalorder %s95, %s97
      %p104 = scmp.eq.s32.totalorder %s24, 1
      %p105 = por %p103, %p104
      %p106 = scmp.ne.s32.totalorder %s97, %s98
      %p107 = scmp.eq.s32.totalorder %s24, 0
      %p108 = por %p106, %p107
      %p109 = scmp.ne.s32.totalorder %s97, %s98
      %p110 = scmp.eq.s32.totalorder %s25, 1
      %p111 = por %p109, %p110
      %p113 = scmp.ne.s32.totalorder %s98, %s112
      %p114 = scmp.eq.s32.totalorder %s25, 0
      %p115 = por %p113, %p114
      %s117 = sadd.s32 %s116, 1
      %p120 = scmp.eq.s32.totalorder %s19, 1
      %p121 = scmp.ne.s32.totalorder %s116, %s118
      %p122 = scmp.eq.s32.totalorder %s19, 0
      %p123 = por %p121, %p122
      %p124 = scmp.ne.s32.totalorder %s116, %s118
      %p125 = scmp.eq.s32.totalorder %s24, 1
      %p126 = por %p124, %p125
      %p127 = scmp.ne.s32.totalorder %s118, %s119
      %p128 = scmp.eq.s32.totalorder %s24, 0
      %p129 = por %p127, %p128
      %p130 = scmp.ne.s32.totalorder %s118, %s119
      %p131 = scmp.eq.s32.totalorder %s25, 1
      %p132 = por %p130, %p131
      %p134 = scmp.ne.s32.totalorder %s119, %s133
      %p135 = scmp.eq.s32.totalorder %s25, 0
      %p136 = por %p134, %p135
      %s137 = ssub.s32 %s19, %s26
      %p138 = scmp.eq.s32.totalorder %s137, 0
      %s140 = sadd.s32 %s139, 1
      %s141 = scalar_select %p138, %s139, %s140
      %p144 = pneg %p138
      %p145 = scmp.eq.s32.totalorder %s19, 1
      %p146 = por %p144, %p145
      %p147 = scmp.ne.s32.totalorder %s139, %s142
      %p148 = scmp.eq.s32.totalorder %s19, 0
      %p149 = por %p147, %p148
      %p150 = scmp.ne.s32.totalorder %s139, %s142
      %p151 = scmp.eq.s32.totalorder %s24, 1
      %p152 = por %p150, %p151
      %p153 = scmp.ne.s32.totalorder %s142, %s143
      %p154 = scmp.eq.s32.totalorder %s24, 0
      %p155 = por %p153, %p154
      %p156 = scmp.ne.s32.totalorder %s142, %s143
      %p157 = scmp.eq.s32.totalorder %s25, 1
      %p158 = por %p156, %p157
      %p160 = scmp.ne.s32.totalorder %s143, %s159
      %p161 = scmp.eq.s32.totalorder %s25, 0
      %p162 = por %p160, %p161
      %p163 = scmp.le.s32.totalorder 1, %s19
      %p164 = scmp.lt.s32.totalorder %s19, 3
      %p165 = pnand %p163, %p164
      %p166 = pneg %p165
      // Predicated region
      $region9: #{tpu_custom_call.1} parent=5 // pred_check
        _
      $region10: #{tpu_custom_call.1} parent=5 // pred_check_branch
        %168 = sbr.rel (%p165) target = $region12
      $region11: #{tpu_custom_call.1} parent=5 // pred_region
        %s169 = ssub.s32 %s19, 1
        // Predicated region
        $region13: #{tpu_custom_call.1} parent=11 // pred_check
          %p170 = pneg %p66
        $region14: #{tpu_custom_call.1} parent=11 // pred_check_branch
          %172 = sbr.rel (%p170) target = $region16
        $region15: #{tpu_custom_call.1} parent=11 // pred_region
          %s174 = ssub.s32 128, 128
          %175 = vsyncadd [#allocation6], %s174
          %s177 = sshll.u32 [#allocation5], 4
          %s178 = int_to_ptr.vmem [resolvable:$true] %s177
          %180 = dma.hbm_to_vmem [thread:$0]  %s1, 128, %s178, [#allocation6]
        $region16: #{tpu_custom_call.1} parent=11 // pred_fallthru
          _
        // Predicated region
        $region17: #{tpu_custom_call.1} parent=11 // pred_check
          %p181 = pneg %p87
        $region18: #{tpu_custom_call.1} parent=11 // pred_check_branch
          %183 = sbr.rel (%p181) target = $region20
        $region19: #{tpu_custom_call.1} parent=11 // pred_region
          %s185 = ssub.s32 2048, 2048
          %186 = vsyncadd [#allocation6], %s185
          %s187 = sshll.u32 [#allocation7], 4
          %s188 = int_to_ptr.vmem [resolvable:$true] %s187
          %193 = dma.hbm_to_vmem [thread:$0]  %s2, 2048, %s188, [#allocation6], 128, 128, 8
        $region20: #{tpu_custom_call.1} parent=11 // pred_fallthru
          _
        // Predicated region
        $region21: #{tpu_custom_call.1} parent=11 // pred_check
          %p194 = pneg %p108
        $region22: #{tpu_custom_call.1} parent=11 // pred_check_branch
          %196 = sbr.rel (%p194) target = $region24
        $region23: #{tpu_custom_call.1} parent=11 // pred_region
          %s198 = ssub.s32 2048, 2048
          %199 = vsyncadd [#allocation9], %s198
          %s200 = sshll.u32 [#allocation8], 4
          %s201 = int_to_ptr.vmem [resolvable:$true] %s200
          %206 = dma.hbm_to_vmem [thread:$0]  %s3, 2048, %s201, [#allocation9], 128, 128, 8
        $region24: #{tpu_custom_call.1} parent=11 // pred_fallthru
          _
        // Predicated region
        $region25: #{tpu_custom_call.1} parent=11 // pred_check
          %p207 = pneg %p129
        $region26: #{tpu_custom_call.1} parent=11 // pred_check_branch
          %209 = sbr.rel (%p207) target = $region28
        $region27: #{tpu_custom_call.1} parent=11 // pred_region
          %s211 = ssub.s32 2048, 2048
          %212 = vsyncadd [#allocation9], %s211
          %s213 = sshll.u32 [#allocation10], 4
          %s214 = int_to_ptr.vmem [resolvable:$true] %s213
          %219 = dma.hbm_to_vmem [thread:$0]  %s4, 2048, %s214, [#allocation9], 128, 128, 8
        $region28: #{tpu_custom_call.1} parent=11 // pred_fallthru
          _
      $region12: #{tpu_custom_call.1} parent=5 // pred_fallthru
        _
      %p220 = scmp.lt.s32.totalorder %s19, 2
      // Predicated region
      $region29: #{tpu_custom_call.1} parent=5 // pred_check
        %p221 = pneg %p220
      $region30: #{tpu_custom_call.1} parent=5 // pred_check_branch
        %223 = sbr.rel (%p221) target = $region32
      $region31: #{tpu_custom_call.1} parent=5 // pred_region
        // Predicated region
        $region33: #{tpu_custom_call.1} parent=31 // pred_check
          %p224 = pneg %p39
        $region34: #{tpu_custom_call.1} parent=31 // pred_check_branch
          %226 = sbr.rel (%p224) target = $region36
        $region35: #{tpu_custom_call.1} parent=31 // pred_region
          %s227 = sand.u32 %s29, 1
          %s228 = scalar_lea.sflag [#allocation3], %s227
          %s229 = sand.u32 %s29, 1
          %s230 = smul.addr %s229, 8
          %s231 = scalar_lea.vmem [#allocation2], %s230
          %s233 = ssub.s32 128, 128
          %234 = vsyncadd %s228, %s233
          %s235 = smul.addr %s19, 128
          %s236 = scalar_lea.hbm %s0, %s235
          %s238 = sshll.u32 %s231, 4
          %s239 = int_to_ptr.vmem [resolvable:$true] %s238
          %241 = dma.hbm_to_vmem [thread:$0]  %s236, 128, %s239, %s228
        $region36: #{tpu_custom_call.1} parent=31 // pred_fallthru
          _
      $region32: #{tpu_custom_call.1} parent=5 // pred_fallthru
        _
      %p242 = scmp.le.s32.totalorder 1, %s19
      %p243 = scmp.lt.s32.totalorder %s19, 3
      %p244 = pnand %p242, %p243
      %p245 = pneg %p244
      // Predicated region
      $region37: #{tpu_custom_call.1} parent=5 // pred_check
        _
      $region38: #{tpu_custom_call.1} parent=5 // pred_check_branch
        %247 = sbr.rel (%p244) target = $region40
      $region39: #{tpu_custom_call.1} parent=5 // pred_region
        %s248 = ssub.s32 %s19, 1
        %s249 = sand.u32 %s32, 1
        %s250 = scalar_lea.sflag [#allocation3], %s249
        %s251 = sand.u32 %s32, 1
        %s252 = smul.addr %s251, 8
        %s253 = scalar_lea.vmem [#allocation2], %s252
        // Predicated region
        $region41: #{tpu_custom_call.1} parent=39 // pred_check
          %p254 = pneg %p45
        $region42: #{tpu_custom_call.1} parent=39 // pred_check_branch
          %256 = sbr.rel (%p254) target = $region44
        $region43: #{tpu_custom_call.1} parent=39 // pred_region
          %257 = dma.done %s250, 128
        $region44: #{tpu_custom_call.1} parent=39 // pred_fallthru
          _
        // Predicated region
        $region45: #{tpu_custom_call.1} parent=39 // pred_check
          %p258 = pneg %p66
        $region46: #{tpu_custom_call.1} parent=39 // pred_check_branch
          %260 = sbr.rel (%p258) target = $region48
        $region47: #{tpu_custom_call.1} parent=39 // pred_region
          %261 = dma.done [#allocation6], 128
        $region48: #{tpu_custom_call.1} parent=39 // pred_fallthru
          _
        // Predicated region
        $region49: #{tpu_custom_call.1} parent=39 // pred_check
          %p262 = pneg %p87
        $region50: #{tpu_custom_call.1} parent=39 // pred_check_branch
          %264 = sbr.rel (%p262) target = $region52
        $region51: #{tpu_custom_call.1} parent=39 // pred_region
          %265 = dma.done [#allocation6], 2048
        $region52: #{tpu_custom_call.1} parent=39 // pred_fallthru
          _
        // Predicated region
        $region53: #{tpu_custom_call.1} parent=39 // pred_check
          %p266 = pneg %p108
        $region54: #{tpu_custom_call.1} parent=39 // pred_check_branch
          %268 = sbr.rel (%p266) target = $region56
        $region55: #{tpu_custom_call.1} parent=39 // pred_region
          %269 = dma.done [#allocation9], 2048
        $region56: #{tpu_custom_call.1} parent=39 // pred_fallthru
          _
        // Predicated region
        $region57: #{tpu_custom_call.1} parent=39 // pred_check
          %p270 = pneg %p129
        $region58: #{tpu_custom_call.1} parent=39 // pred_check_branch
          %272 = sbr.rel (%p270) target = $region60
        $region59: #{tpu_custom_call.1} parent=39 // pred_region
          %273 = dma.done [#allocation9], 2048
        $region60: #{tpu_custom_call.1} parent=39 // pred_fallthru
          _
        %s274 = sand.u32 %s32, 1
        %s275 = scalar_lea.sflag [#allocation3], %s274
        %s276 = sand.u32 %s32, 1
        %s277 = smul.addr %s276, 8
        %s278 = scalar_lea.vmem [#allocation2], %s277
        %p279 = pneg %p45
        %p280 = pneg %p42
        %p281 = pneg %p66
        %p282 = pneg %p63
        %p283 = pneg %p87
        %p284 = pneg %p84
        %p285 = pneg %p108
        %p286 = pneg %p105
        %p287 = pneg %p129
        %p288 = pneg %p126
        %p289 = pneg %p155
        %p290 = pneg %p152
        %s291 = sand.u32 %s142, 1
        %s292 = scalar_lea.sflag [#allocation4], %s291
        %s293 = sand.u32 %s142, 1
        %s294 = smul.addr %s293, 8
        %s295 = scalar_lea.vmem [#allocation11], %s294
        %v296 = vld [vmem:[%s253] sm:$0xff]
        %v297 = vld [vmem:[#allocation5] sm:$0xff]
        %v298 = vlaneseq
        %v299 = vand.u32 %v298, 127
        %vm300 = vcmp.lt.s32.totalorder %v299, 32
        %v301 = vsel %vm300, 1, 0
        %v302 = vcvt.s32.f32 %v301
        %v303 = vmul.f32 %v296, %v302
        %304 = vadd.xlane.f32.xlu0 %v303
        %v305 = vpop.xlane.xlu0 %304
        %v306 = vmul.f32 %v305, 0.03125
        %v307 = vsub.f32 %v296, %v306
        %v308 = vmul.f32 %v307, %v302
        %v309 = vmul.f32 %v308, %v308
        %310 = vadd.xlane.f32.xlu0 %v309
        %v311 = vpop.xlane.xlu0 %310
        %v312 = vmul.f32 %v311, 0.03125
        %v313 = vadd.f32 %v312, 1e-05
        %v314 = vrsqrt.pop %v313
        %v315 = vmul.f32 %v308, %v314
        %v316 = vlaneseq
        %v317 = vshrl.u32 %v316, 7
        %v318 = vsub.s32 0, %v317
        %v319 = vrot.slane %v297, %v318
        %v320 = vmul.f32 %v315, %v319
        %v321 = vlaneseq
        %v322 = vshrl.u32 %v321, 7
        %v323 = vsub.s32 1, %v322
        %v324 = vrot.slane %v297, %v323
        %v325 = vadd.f32 %v320, %v324
        %v326 = vld [vmem:[#allocation7] sm:$0xff]
        %v327 = vld [vmem:[#allocation7 + $0x8] sm:$0xff]
        %v328 = vld [vmem:[#allocation7 + $0x10] sm:$0xff]
        %v329 = vld [vmem:[#allocation7 + $0x18] sm:$0xff]
        %v330 = vld [vmem:[#allocation7 + $0x20] sm:$0xff]
        %v331 = vld [vmem:[#allocation7 + $0x28] sm:$0xff]
        %v332 = vld [vmem:[#allocation7 + $0x30] sm:$0xff]
        %v333 = vld [vmem:[#allocation7 + $0x38] sm:$0xff]
        %v334 = vld [vmem:[#allocation7 + $0x40] sm:$0xff]
        %v335 = vld [vmem:[#allocation7 + $0x48] sm:$0xff]
        %v336 = vld [vmem:[#allocation7 + $0x50] sm:$0xff]
        %v337 = vld [vmem:[#allocation7 + $0x58] sm:$0xff]
        %v338 = vld [vmem:[#allocation7 + $0x60] sm:$0xff]
        %v339 = vld [vmem:[#allocation7 + $0x68] sm:$0xff]
        %v340 = vld [vmem:[#allocation7 + $0x70] sm:$0xff]
        %v341 = vld [vmem:[#allocation7 + $0x78] sm:$0xff]
        %v342 = vlaneseq
        %v343 = vshrl.u32 %v342, 7
        %v344 = vsub.s32 2, %v343
        %v345 = vrot.slane %v297, %v344
        %346 = vmatprep.subr.mxu0 0.0
        %347 = vmatpush1.msra.mxu0 %v341
        %348 = vmatprep.subr.mxu0 0.0
        %349 = vmatpush1.msra.mxu0 %v340
        %350 = vmatprep.subr.mxu0 0.0
        %351 = vmatpush1.msra.mxu0 %v339
        %352 = vmatprep.subr.mxu0 0.0
        %353 = vmatpush1.msra.mxu0 %v338
        %354 = vmatprep.subr.mxu0 0.0
        %355 = vmatpush1.msra.mxu0 %v337
        %356 = vmatprep.subr.mxu0 0.0
        %357 = vmatpush1.msra.mxu0 %v336
        %358 = vmatprep.subr.mxu0 0.0
        %359 = vmatpush1.msra.mxu0 %v335
        %360 = vmatprep.subr.mxu0 0.0
        %361 = vmatpush1.msra.mxu0 %v334
        %362 = vmatprep.subr.mxu0 0.0
        %363 = vmatpush1.msra.mxu0 %v333
        %364 = vmatprep.subr.mxu0 0.0
        %365 = vmatpush1.msra.mxu0 %v332
        %366 = vmatprep.subr.mxu0 0.0
        %367 = vmatpush1.msra.mxu0 %v331
        %368 = vmatprep.subr.mxu0 0.0
        %369 = vmatpush1.msra.mxu0 %v330
        %370 = vmatprep.subr.mxu0 0.0
        %371 = vmatpush1.msra.mxu0 %v329
        %372 = vmatprep.subr.mxu0 0.0
        %373 = vmatpush1.msra.mxu0 %v328
        %374 = vmatprep.subr.mxu0 0.0
        %375 = vmatpush1.msra.mxu0 %v327
        %376 = vmatprep.subr.mxu0 0.0
        %377 = vmatpush1.msra.mxu0 %v326
        %378 = vmatprep.subr.mxu0 0.0
        %379 = vmatpush2.msra.mxu0 0.0
        %380 = vmatprep.subr.mxu0 0.0
        %381 = vmatpush2.msra.mxu0 0.0
        %382 = vmatprep.subr.mxu0 0.0
        %383 = vmatpush2.msra.mxu0 0.0
        %384 = vmatprep.subr.mxu0 0.0
        %385 = vmatpush2.msra.mxu0 0.0
        %386 = vmatprep.subr.mxu0 0.0
        %387 = vmatpush2.msra.mxu0 0.0
        %388 = vmatprep.subr.mxu0 0.0
        %389 = vmatpush2.msra.mxu0 0.0
        %390 = vmatprep.subr.mxu0 0.0
        %391 = vmatpush2.msra.mxu0 0.0
        %392 = vmatprep.subr.mxu0 0.0
        %393 = vmatpush2.msra.mxu0 0.0
        %394 = vmatprep.subr.mxu0 0.0
        %395 = vmatpush2.msra.mxu0 0.0
        %396 = vmatprep.subr.mxu0 0.0
        %397 = vmatpush2.msra.mxu0 0.0
        %398 = vmatprep.subr.mxu0 0.0
        %399 = vmatpush2.msra.mxu0 0.0
        %400 = vmatprep.subr.mxu0 0.0
        %401 = vmatpush2.msra.mxu0 0.0
        %402 = vmatprep.subr.mxu0 0.0
        %403 = vmatpush2.msra.mxu0 0.0
        %404 = vmatprep.subr.mxu0 0.0
        %405 = vmatpush2.msra.mxu0 0.0
        %406 = vmatprep.subr.mxu0 0.0
        %407 = vmatpush2.msra.mxu0 0.0
        %408 = vmatprep.subr.mxu0 0.0
        %409 = vmatpush2.msra.mxu0 0.0
        %410 = vmatprep.mubr.f32.mxu0 0.0
        %411 = vmatmul.mubr.f32.gmra.mxu0 %v325
        %v412 = vpop.f32.mrf.mxu0
        %v413 = vadd.f32 %v345, %v412
        %v414 = vpop.f32.mrf.mxu0
        %415 = vdwg.mxu0
        %v416 = vmax.f32 %v413, 0.0
        %v417 = vld [vmem:[#allocation8] sm:$0xff]
        %v418 = vld [vmem:[#allocation8 + $0x8] sm:$0xff]
        %v419 = vld [vmem:[#allocation8 + $0x10] sm:$0xff]
        %v420 = vld [vmem:[#allocation8 + $0x18] sm:$0xff]
        %v421 = vld [vmem:[#allocation8 + $0x20] sm:$0xff]
        %v422 = vld [vmem:[#allocation8 + $0x28] sm:$0xff]
        %v423 = vld [vmem:[#allocation8 + $0x30] sm:$0xff]
        %v424 = vld [vmem:[#allocation8 + $0x38] sm:$0xff]
        %v425 = vld [vmem:[#allocation8 + $0x40] sm:$0xff]
        %v426 = vld [vmem:[#allocation8 + $0x48] sm:$0xff]
        %v427 = vld [vmem:[#allocation8 + $0x50] sm:$0xff]
        %v428 = vld [vmem:[#allocation8 + $0x58] sm:$0xff]
        %v429 = vld [vmem:[#allocation8 + $0x60] sm:$0xff]
        %v430 = vld [vmem:[#allocation8 + $0x68] sm:$0xff]
        %v431 = vld [vmem:[#allocation8 + $0x70] sm:$0xff]
        %v432 = vld [vmem:[#allocation8 + $0x78] sm:$0xff]
        %v433 = vlaneseq
        %v434 = vshrl.u32 %v433, 7
        %v435 = vsub.s32 3, %v434
        %v436 = vrot.slane %v297, %v435
        %437 = vmatprep.subr.mxu0 0.0
        %438 = vmatpush1.msra.mxu0 %v432
        %439 = vmatprep.subr.mxu0 0.0
        %440 = vmatpush1.msra.mxu0 %v431
        %441 = vmatprep.subr.mxu0 0.0
        %442 = vmatpush1.msra.mxu0 %v430
        %443 = vmatprep.subr.mxu0 0.0
        %444 = vmatpush1.msra.mxu0 %v429
        %445 = vmatprep.subr.mxu0 0.0
        %446 = vmatpush1.msra.mxu0 %v428
        %447 = vmatprep.subr.mxu0 0.0
        %448 = vmatpush1.msra.mxu0 %v427
        %449 = vmatprep.subr.mxu0 0.0
        %450 = vmatpush1.msra.mxu0 %v426
        %451 = vmatprep.subr.mxu0 0.0
        %452 = vmatpush1.msra.mxu0 %v425
        %453 = vmatprep.subr.mxu0 0.0
        %454 = vmatpush1.msra.mxu0 %v424
        %455 = vmatprep.subr.mxu0 0.0
        %456 = vmatpush1.msra.mxu0 %v423
        %457 = vmatprep.subr.mxu0 0.0
        %458 = vmatpush1.msra.mxu0 %v422
        %459 = vmatprep.subr.mxu0 0.0
        %460 = vmatpush1.msra.mxu0 %v421
        %461 = vmatprep.subr.mxu0 0.0
        %462 = vmatpush1.msra.mxu0 %v420
        %463 = vmatprep.subr.mxu0 0.0
        %464 = vmatpush1.msra.mxu0 %v419
        %465 = vmatprep.subr.mxu0 0.0
        %466 = vmatpush1.msra.mxu0 %v418
        %467 = vmatprep.subr.mxu0 0.0
        %468 = vmatpush1.msra.mxu0 %v417
        %469 = vmatprep.subr.mxu0 0.0
        %470 = vmatpush2.msra.mxu0 0.0
        %471 = vmatprep.subr.mxu0 0.0
        %472 = vmatpush2.msra.mxu0 0.0
        %473 = vmatprep.subr.mxu0 0.0
        %474 = vmatpush2.msra.mxu0 0.0
        %475 = vmatprep.subr.mxu0 0.0
        %476 = vmatpush2.msra.mxu0 0.0
        %477 = vmatprep.subr.mxu0 0.0
        %478 = vmatpush2.msra.mxu0 0.0
        %479 = vmatprep.subr.mxu0 0.0
        %480 = vmatpush2.msra.mxu0 0.0
        %481 = vmatprep.subr.mxu0 0.0
        %482 = vmatpush2.msra.mxu0 0.0
        %483 = vmatprep.subr.mxu0 0.0
        %484 = vmatpush2.msra.mxu0 0.0
        %485 = vmatprep.subr.mxu0 0.0
        %486 = vmatpush2.msra.mxu0 0.0
        %487 = vmatprep.subr.mxu0 0.0
        %488 = vmatpush2.msra.mxu0 0.0
        %489 = vmatprep.subr.mxu0 0.0
        %490 = vmatpush2.msra.mxu0 0.0
        %491 = vmatprep.subr.mxu0 0.0
        %492 = vmatpush2.msra.mxu0 0.0
        %493 = vmatprep.subr.mxu0 0.0
        %494 = vmatpush2.msra.mxu0 0.0
        %495 = vmatprep.subr.mxu0 0.0
        %496 = vmatpush2.msra.mxu0 0.0
        %497 = vmatprep.subr.mxu0 0.0
        %498 = vmatpush2.msra.mxu0 0.0
        %499 = vmatprep.subr.mxu0 0.0
        %500 = vmatpush2.msra.mxu0 0.0
        %501 = vmatprep.mubr.f32.mxu0 0.0
        %502 = vmatmul.mubr.f32.gmra.mxu0 %v416
        %v503 = vpop.f32.mrf.mxu0
        %v504 = vadd.f32 %v436, %v503
        %v505 = vpop.f32.mrf.mxu0
        %506 = vdwg.mxu0
        %v507 = vmax.f32 %v504, 0.0
        %v508 = vld [vmem:[#allocation10] sm:$0xff]
        %v509 = vld [vmem:[#allocation10 + $0x8] sm:$0xff]
        %v510 = vld [vmem:[#allocation10 + $0x10] sm:$0xff]
        %v511 = vld [vmem:[#allocation10 + $0x18] sm:$0xff]
        %v512 = vld [vmem:[#allocation10 + $0x20] sm:$0xff]
        %v513 = vld [vmem:[#allocation10 + $0x28] sm:$0xff]
        %v514 = vld [vmem:[#allocation10 + $0x30] sm:$0xff]
        %v515 = vld [vmem:[#allocation10 + $0x38] sm:$0xff]
        %v516 = vld [vmem:[#allocation10 + $0x40] sm:$0xff]
        %v517 = vld [vmem:[#allocation10 + $0x48] sm:$0xff]
        %v518 = vld [vmem:[#allocation10 + $0x50] sm:$0xff]
        %v519 = vld [vmem:[#allocation10 + $0x58] sm:$0xff]
        %v520 = vld [vmem:[#allocation10 + $0x60] sm:$0xff]
        %v521 = vld [vmem:[#allocation10 + $0x68] sm:$0xff]
        %v522 = vld [vmem:[#allocation10 + $0x70] sm:$0xff]
        %v523 = vld [vmem:[#allocation10 + $0x78] sm:$0xff]
        %v524 = vlaneseq
        %v525 = vshrl.u32 %v524, 7
        %v526 = vsub.s32 4, %v525
        %v527 = vrot.slane %v297, %v526
        %528 = vmatprep.subr.mxu0 0.0
        %529 = vmatpush1.msra.mxu0 %v523
        %530 = vmatprep.subr.mxu0 0.0
        %531 = vmatpush1.msra.mxu0 %v522
        %532 = vmatprep.subr.mxu0 0.0
        %533 = vmatpush1.msra.mxu0 %v521
        %534 = vmatprep.subr.mxu0 0.0
        %535 = vmatpush1.msra.mxu0 %v520
        %536 = vmatprep.subr.mxu0 0.0
        %537 = vmatpush1.msra.mxu0 %v519
        %538 = vmatprep.subr.mxu0 0.0
        %539 = vmatpush1.msra.mxu0 %v518
        %540 = vmatprep.subr.mxu0 0.0
        %541 = vmatpush1.msra.mxu0 %v517
        %542 = vmatprep.subr.mxu0 0.0
        %543 = vmatpush1.msra.mxu0 %v516
        %544 = vmatprep.subr.mxu0 0.0
        %545 = vmatpush1.msra.mxu0 %v515
        %546 = vmatprep.subr.mxu0 0.0
        %547 = vmatpush1.msra.mxu0 %v514
        %548 = vmatprep.subr.mxu0 0.0
        %549 = vmatpush1.msra.mxu0 %v513
        %550 = vmatprep.subr.mxu0 0.0
        %551 = vmatpush1.msra.mxu0 %v512
        %552 = vmatprep.subr.mxu0 0.0
        %553 = vmatpush1.msra.mxu0 %v511
        %554 = vmatprep.subr.mxu0 0.0
        %555 = vmatpush1.msra.mxu0 %v510
        %556 = vmatprep.subr.mxu0 0.0
        %557 = vmatpush1.msra.mxu0 %v509
        %558 = vmatprep.subr.mxu0 0.0
        %559 = vmatpush1.msra.mxu0 %v508
        %560 = vmatprep.subr.mxu0 0.0
        %561 = vmatpush2.msra.mxu0 0.0
        %562 = vmatprep.subr.mxu0 0.0
        %563 = vmatpush2.msra.mxu0 0.0
        %564 = vmatprep.subr.mxu0 0.0
        %565 = vmatpush2.msra.mxu0 0.0
        %566 = vmatprep.subr.mxu0 0.0
        %567 = vmatpush2.msra.mxu0 0.0
        %568 = vmatprep.subr.mxu0 0.0
        %569 = vmatpush2.msra.mxu0 0.0
        %570 = vmatprep.subr.mxu0 0.0
        %571 = vmatpush2.msra.mxu0 0.0
        %572 = vmatprep.subr.mxu0 0.0
        %573 = vmatpush2.msra.mxu0 0.0
        %574 = vmatprep.subr.mxu0 0.0
        %575 = vmatpush2.msra.mxu0 0.0
        %576 = vmatprep.subr.mxu0 0.0
        %577 = vmatpush2.msra.mxu0 0.0
        %578 = vmatprep.subr.mxu0 0.0
        %579 = vmatpush2.msra.mxu0 0.0
        %580 = vmatprep.subr.mxu0 0.0
        %581 = vmatpush2.msra.mxu0 0.0
        %582 = vmatprep.subr.mxu0 0.0
        %583 = vmatpush2.msra.mxu0 0.0
        %584 = vmatprep.subr.mxu0 0.0
        %585 = vmatpush2.msra.mxu0 0.0
        %586 = vmatprep.subr.mxu0 0.0
        %587 = vmatpush2.msra.mxu0 0.0
        %588 = vmatprep.subr.mxu0 0.0
        %589 = vmatpush2.msra.mxu0 0.0
        %590 = vmatprep.subr.mxu0 0.0
        %591 = vmatpush2.msra.mxu0 0.0
        %592 = vmatprep.mubr.f32.mxu0 0.0
        %593 = vmatmul.mubr.f32.gmra.mxu0 %v507
        %v594 = vpop.f32.mrf.mxu0
        %v595 = vadd.f32 %v527, %v594
        %v596 = vpop.f32.mrf.mxu0
        %597 = vdwg.mxu0
        %v598 = vadd.f32 %v296, %v595
        %v599 = vmul.f32 %v598, %v302
        %600 = vadd.xlane.f32.xlu0 %v599
        %v601 = vpop.xlane.xlu0 %600
        %v602 = vmul.f32 %v601, 0.03125
        %v603 = vsub.f32 %v598, %v602
        %v604 = vmul.f32 %v603, %v302
        %v605 = vmul.f32 %v604, %v604
        %606 = vadd.xlane.f32.xlu0 %v605
        %v607 = vpop.xlane.xlu0 %606
        %v608 = vmul.f32 %v607, 0.03125
        %v609 = vadd.f32 %v608, 1e-05
        %v610 = vrsqrt.pop %v609
        %v611 = vmul.f32 %v604, %v610
        %v612 = vlaneseq
        %v613 = vshrl.u32 %v612, 7
        %v614 = vsub.s32 5, %v613
        %v615 = vrot.slane %v297, %v614
        %v616 = vmul.f32 %v611, %v615
        %v617 = vlaneseq
        %v618 = vshrl.u32 %v617, 7
        %v619 = vsub.s32 6, %v618
        %v620 = vrot.slane %v297, %v619
        %v621 = vadd.f32 %v616, %v620
        %622 = vst [vmem:[%s295] sm:$0xff] %v621
        %s623 = sand.u32 %s142, 1
        %s624 = scalar_lea.sflag [#allocation4], %s623
        %s625 = sand.u32 %s142, 1
        %s626 = smul.addr %s625, 8
        %s627 = scalar_lea.vmem [#allocation11], %s626
        // Predicated region
        $region61: #{tpu_custom_call.1} parent=39 // pred_check
          %p628 = pneg %p152
        $region62: #{tpu_custom_call.1} parent=39 // pred_check_branch
          %630 = sbr.rel (%p628) target = $region64
        $region63: #{tpu_custom_call.1} parent=39 // pred_region
          %s632 = ssub.s32 128, 128
          %633 = vsyncadd %s624, %s632
          %s634 = smul.addr %s24, 128
          %s635 = scalar_lea.hbm %s5, %s634
          %s637 = sshll.u32 %s627, 4
          %s638 = int_to_ptr.vmem [resolvable:$true] %s637
          %640 = dma.vmem_to_hbm [thread:$0]  %s638, 128, %s635, %s624
        $region64: #{tpu_custom_call.1} parent=39 // pred_fallthru
          _
      $region40: #{tpu_custom_call.1} parent=5 // pred_fallthru
        _
      %p641 = scmp.le.s32.totalorder 2, %s19
      // Predicated region
      $region65: #{tpu_custom_call.1} parent=5 // pred_check
        %p642 = pneg %p641
      $region66: #{tpu_custom_call.1} parent=5 // pred_check_branch
        %644 = sbr.rel (%p642) target = $region68
      $region67: #{tpu_custom_call.1} parent=5 // pred_region
        %s645 = ssub.s32 %s19, 2
        // Predicated region
        $region69: #{tpu_custom_call.1} parent=67 // pred_check
          %p646 = pneg %p158
        $region70: #{tpu_custom_call.1} parent=67 // pred_check_branch
          %648 = sbr.rel (%p646) target = $region72
        $region71: #{tpu_custom_call.1} parent=67 // pred_region
          %s649 = sand.u32 %s143, 1
          %s650 = scalar_lea.sflag [#allocation4], %s649
          %s651 = sand.u32 %s143, 1
          %s652 = smul.addr %s651, 8
          %s653 = scalar_lea.vmem [#allocation11], %s652
          %654 = dma.done %s650, 128
        $region72: #{tpu_custom_call.1} parent=67 // pred_fallthru
          _
      $region68: #{tpu_custom_call.1} parent=5 // pred_fallthru
        _
    $region6: #{tpu_custom_call.1} parent=1 // loop_footer
      %s23 = sadd.s32 1, %s19
    $region7: #{tpu_custom_call.1} parent=1 // loop_footer_branch
      %18 = sbr.rel target = $region3
    $region8: #{tpu_custom_call.1} parent=1 // loop_exit
      _
    %655 = vsyncpa [#allocation3], 1
    %s656 = scalar_lea.sflag [#allocation3], 1
    %657 = vsyncpa %s656, 1
    %658 = vsyncpa [#allocation6], 1
    %659 = vsyncpa [#allocation9], 1
    %660 = vsyncpa [#allocation4], 1
    %s661 = scalar_lea.sflag [#allocation4], 1
    %662 = vsyncpa %s661, 1

// kernel: tpu_custom_call.1
$region0: #{tpu_custom_call.1}
  #allocation0 [shape = 'u32[]', space=smem, size = 0x4, offset = 0x4, fixed_abs, tag = 'smem constant byte address 0x4 - core index']
  #allocation1 [shape = 'u32[144,128]{1,0:T(1,128)}', space=vmem, size = 0x12000, scoped, tag = 'internal scratch']
  %s0 = inlined_call_operand.hbm [shape: f32[16,128], index: 0, kind: input, shape index: {}]
  %s1 = inlined_call_operand.hbm [shape: f32[8,128], index: 1, kind: input, shape index: {}]
  %s2 = inlined_call_operand.hbm [shape: f32[128,128], index: 2, kind: input, shape index: {}]
  %s3 = inlined_call_operand.hbm [shape: f32[128,128], index: 3, kind: input, shape index: {}]
  %s4 = inlined_call_operand.hbm [shape: f32[128,128], index: 4, kind: input, shape index: {}]
  %s5 = inlined_call_operand.hbm [shape: f32[16,128], index: 5, kind: output, shape index: {}]
  %s6 = sld [smem:[#allocation0]]
  $region73: #{tpu_custom_call.1} parent=0
    _
  %s8 = ssub.s32 1, %s6
  %s9 = scalar_select 0, %s8, %s6
  $region1: #{tpu_custom_call.1} parent=0
    #allocation2 [shape = 'u8[8192]{0}', space=vmem, size = 0x2000, scoped, tag = 'input window, operand 0']
    #allocation3 [shape = 's32[2]{0}', space=sflag, size = 0x8, scoped, tag = 'scoped memory for tpu_custom_call.1']
    #allocation4 [shape = 's32[2]{0}', space=sflag, size = 0x8, scoped, tag = 'scoped memory for tpu_custom_call.1']
    #allocation5 [shape = 'u8[4096]{0}', space=vmem, size = 0x1000, scoped, tag = 'input window, operand 1, single buffered']
    #allocation6 [shape = 's32[1]{0}', space=sflag, size = 0x4, scoped, tag = 'scoped memory for tpu_custom_call.1']
    #allocation7 [shape = 'u8[65536]{0}', space=vmem, size = 0x10000, scoped, tag = 'input window, operand 2, single buffered']
    #allocation8 [shape = 'u8[65536]{0}', space=vmem, size = 0x10000, scoped, tag = 'input window, operand 3, single buffered']
    #allocation9 [shape = 's32[1]{0}', space=sflag, size = 0x4, scoped, tag = 'scoped memory for tpu_custom_call.1']
    #allocation10 [shape = 'u8[65536]{0}', space=vmem, size = 0x10000, scoped, tag = 'input window, operand 4, single buffered']
    #allocation11 [shape = 'u8[8192]{0}', space=vmem, size = 0x2000, scoped, tag = 'output window, operand 0']
    %10 = vsyncpa [#allocation3], 0
    %s11 = scalar_lea.sflag [#allocation3], 1
    %12 = vsyncpa %s11, 0
    %13 = vsyncpa [#allocation6], 0
    %14 = vsyncpa [#allocation9], 0
    %15 = vsyncpa [#allocation4], 0
    %s16 = scalar_lea.sflag [#allocation4], 1
    %17 = vsyncpa %s16, 0
    loop: start=0, step=1, limit=4
    $region2: #{tpu_custom_call.1} parent=1 // loop_pre_header
      _
    $region3: #{tpu_custom_call.1} parent=1 // loop_header
      %s19 = sphi 0, %s23
      %p20 = scmp.ge.s32.totalorder %s19, 4
      %s29 = sphi 0, %s31
      %s32 = sphi 0, %s29
      %s33 = sphi 0, %s32
      %s49 = sphi 0, %s33
      %s53 = sphi 0, %s53
      %s55 = sphi 0, %s53
      %s56 = sphi 0, %s55
      %s70 = sphi 0, %s56
      %s74 = sphi 0, %s74
      %s76 = sphi 0, %s74
      %s77 = sphi 0, %s76
      %s91 = sphi 0, %s77
      %s95 = sphi 0, %s95
      %s97 = sphi 0, %s95
      %s98 = sphi 0, %s97
      %s112 = sphi 0, %s98
      %s116 = sphi 0, %s116
      %s118 = sphi 0, %s116
      %s119 = sphi 0, %s118
      %s133 = sphi 0, %s119
      %s139 = sphi 0, %s141
      %s142 = sphi 0, %s139
      %s143 = sphi 0, %s142
      %s159 = sphi 0, %s143
    $region4: #{tpu_custom_call.1} parent=1 // loop_header_branch
      %22 = sbr.rel (%p20) target = $region8
    $region5: #{tpu_custom_call.1} parent=1 // loop_body
      %s24 = ssub.s32 %s19, 1
      %s25 = ssub.s32 %s19, 2
      %s26 = sadd.s32 %s19, 1
      %s27 = ssub.s32 %s19, %s26
      %p28 = scmp.eq.s32.totalorder %s27, 0
      %s30 = sadd.s32 %s29, 1
      %s31 = scalar_select %p28, %s29, %s30
      %p34 = pneg %p28
      %p35 = scmp.eq.s32.totalorder %s19, 1
      %p36 = por %p34, %p35
      %p37 = scmp.ne.s32.totalorder %s29, %s32
      %p38 = scmp.eq.s32.totalorder %s19, 0
      %p39 = por %p37, %p38
      %p40 = scmp.ne.s32.totalorder %s29, %s32
      %p41 = scmp.eq.s32.totalorder %s24, 1
      %p42 = por %p40, %p41
      %p43 = scmp.ne.s32.totalorder %s32, %s33
      %p44 = scmp.eq.s32.totalorder %s24, 0
      %p45 = por %p43, %p44
      %p46 = scmp.ne.s32.totalorder %s32, %s33
      %p47 = scmp.eq.s32.totalorder %s25, 1
      %p48 = por %p46, %p47
      %p50 = scmp.ne.s32.totalorder %s33, %s49
      %p51 = scmp.eq.s32.totalorder %s25, 0
      %p52 = por %p50, %p51
      %s54 = sadd.s32 %s53, 1
      %p57 = scmp.eq.s32.totalorder %s19, 1
      %p58 = scmp.ne.s32.totalorder %s53, %s55
      %p59 = scmp.eq.s32.totalorder %s19, 0
      %p60 = por %p58, %p59
      %p61 = scmp.ne.s32.totalorder %s53, %s55
      %p62 = scmp.eq.s32.totalorder %s24, 1
      %p63 = por %p61, %p62
      %p64 = scmp.ne.s32.totalorder %s55, %s56
      %p65 = scmp.eq.s32.totalorder %s24, 0
      %p66 = por %p64, %p65
      %p67 = scmp.ne.s32.totalorder %s55, %s56
      %p68 = scmp.eq.s32.totalorder %s25, 1
      %p69 = por %p67, %p68
      %p71 = scmp.ne.s32.totalorder %s56, %s70
      %p72 = scmp.eq.s32.totalorder %s25, 0
      %p73 = por %p71, %p72
      %s75 = sadd.s32 %s74, 1
      %p78 = scmp.eq.s32.totalorder %s19, 1
      %p79 = scmp.ne.s32.totalorder %s74, %s76
      %p80 = scmp.eq.s32.totalorder %s19, 0
      %p81 = por %p79, %p80
      %p82 = scmp.ne.s32.totalorder %s74, %s76
      %p83 = scmp.eq.s32.totalorder %s24, 1
      %p84 = por %p82, %p83
      %p85 = scmp.ne.s32.totalorder %s76, %s77
      %p86 = scmp.eq.s32.totalorder %s24, 0
      %p87 = por %p85, %p86
      %p88 = scmp.ne.s32.totalorder %s76, %s77
      %p89 = scmp.eq.s32.totalorder %s25, 1
      %p90 = por %p88, %p89
      %p92 = scmp.ne.s32.totalorder %s77, %s91
      %p93 = scmp.eq.s32.totalorder %s25, 0
      %p94 = por %p92, %p93
      %s96 = sadd.s32 %s95, 1
      %p99 = scmp.eq.s32.totalorder %s19, 1
      %p100 = scmp.ne.s32.totalorder %s95, %s97
      %p101 = scmp.eq.s32.totalorder %s19, 0
      %p102 = por %p100, %p101
      %p103 = scmp.ne.s32.totalorder %s95, %s97
      %p104 = scmp.eq.s32.totalorder %s24, 1
      %p105 = por %p103, %p104
      %p106 = scmp.ne.s32.totalorder %s97, %s98
      %p107 = scmp.eq.s32.totalorder %s24, 0
      %p108 = por %p106, %p107
      %p109 = scmp.ne.s32.totalorder %s97, %s98
      %p110 = scmp.eq.s32.totalorder %s25, 1
      %p111 = por %p109, %p110
      %p113 = scmp.ne.s32.totalorder %s98, %s112
      %p114 = scmp.eq.s32.totalorder %s25, 0
      %p115 = por %p113, %p114
      %s117 = sadd.s32 %s116, 1
      %p120 = scmp.eq.s32.totalorder %s19, 1
      %p121 = scmp.ne.s32.totalorder %s116, %s118
      %p122 = scmp.eq.s32.totalorder %s19, 0
      %p123 = por %p121, %p122
      %p124 = scmp.ne.s32.totalorder %s116, %s118
      %p125 = scmp.eq.s32.totalorder %s24, 1
      %p126 = por %p124, %p125
      %p127 = scmp.ne.s32.totalorder %s118, %s119
      %p128 = scmp.eq.s32.totalorder %s24, 0
      %p129 = por %p127, %p128
      %p130 = scmp.ne.s32.totalorder %s118, %s119
      %p131 = scmp.eq.s32.totalorder %s25, 1
      %p132 = por %p130, %p131
      %p134 = scmp.ne.s32.totalorder %s119, %s133
      %p135 = scmp.eq.s32.totalorder %s25, 0
      %p136 = por %p134, %p135
      %s137 = ssub.s32 %s19, %s26
      %p138 = scmp.eq.s32.totalorder %s137, 0
      %s140 = sadd.s32 %s139, 1
      %s141 = scalar_select %p138, %s139, %s140
      %p144 = pneg %p138
      %p145 = scmp.eq.s32.totalorder %s19, 1
      %p146 = por %p144, %p145
      %p147 = scmp.ne.s32.totalorder %s139, %s142
      %p148 = scmp.eq.s32.totalorder %s19, 0
      %p149 = por %p147, %p148
      %p150 = scmp.ne.s32.totalorder %s139, %s142
      %p151 = scmp.eq.s32.totalorder %s24, 1
      %p152 = por %p150, %p151
      %p153 = scmp.ne.s32.totalorder %s142, %s143
      %p154 = scmp.eq.s32.totalorder %s24, 0
      %p155 = por %p153, %p154
      %p156 = scmp.ne.s32.totalorder %s142, %s143
      %p157 = scmp.eq.s32.totalorder %s25, 1
      %p158 = por %p156, %p157
      %p160 = scmp.ne.s32.totalorder %s143, %s159
      %p161 = scmp.eq.s32.totalorder %s25, 0
      %p162 = por %p160, %p161
      %p163 = scmp.le.s32.totalorder 1, %s19
      %p164 = scmp.lt.s32.totalorder %s19, 3
      %p165 = pnand %p163, %p164
      %p166 = pneg %p165
      // Predicated region
      $region9: #{tpu_custom_call.1} parent=5 // pred_check
        _
      $region10: #{tpu_custom_call.1} parent=5 // pred_check_branch
        %168 = sbr.rel (%p165) target = $region12
      $region11: #{tpu_custom_call.1} parent=5 // pred_region
        %s169 = ssub.s32 %s19, 1
        // Predicated region
        $region13: #{tpu_custom_call.1} parent=11 // pred_check
          %p170 = pneg %p66
        $region14: #{tpu_custom_call.1} parent=11 // pred_check_branch
          %172 = sbr.rel (%p170) target = $region16
        $region15: #{tpu_custom_call.1} parent=11 // pred_region
          %s174 = ssub.s32 128, 128
          %175 = vsyncadd [#allocation6], %s174
          %s177 = sshll.u32 [#allocation5], 4
          %s178 = int_to_ptr.vmem [resolvable:$true] %s177
          %180 = dma.hbm_to_vmem [thread:$0]  %s1, 128, %s178, [#allocation6]
        $region16: #{tpu_custom_call.1} parent=11 // pred_fallthru
          _
        // Predicated region
        $region17: #{tpu_custom_call.1} parent=11 // pred_check
          %p181 = pneg %p87
        $region18: #{tpu_custom_call.1} parent=11 // pred_check_branch
          %183 = sbr.rel (%p181) target = $region20
        $region19: #{tpu_custom_call.1} parent=11 // pred_region
          %s185 = ssub.s32 2048, 2048
          %186 = vsyncadd [#allocation6], %s185
          %s187 = sshll.u32 [#allocation7], 4
          %s188 = int_to_ptr.vmem [resolvable:$true] %s187
          %193 = dma.hbm_to_vmem [thread:$0]  %s2, 2048, %s188, [#allocation6], 128, 128, 8
        $region20: #{tpu_custom_call.1} parent=11 // pred_fallthru
          _
        // Predicated region
        $region21: #{tpu_custom_call.1} parent=11 // pred_check
          %p194 = pneg %p108
        $region22: #{tpu_custom_call.1} parent=11 // pred_check_branch
          %196 = sbr.rel (%p194) target = $region24
        $region23: #{tpu_custom_call.1} parent=11 // pred_region
          %s198 = ssub.s32 2048, 2048
          %199 = vsyncadd [#allocation9], %s198
          %s200 = sshll.u32 [#allocation8], 4
          %s201 = int_to_ptr.vmem [resolvable:$true] %s200
          %206 = dma.hbm_to_vmem [thread:$0]  %s3, 2048, %s201, [#allocation9], 128, 128, 8
        $region24: #{tpu_custom_call.1} parent=11 // pred_fallthru
          _
        // Predicated region
        $region25: #{tpu_custom_call.1} parent=11 // pred_check
          %p207 = pneg %p129
        $region26: #{tpu_custom_call.1} parent=11 // pred_check_branch
          %209 = sbr.rel (%p207) target = $region28
        $region27: #{tpu_custom_call.1} parent=11 // pred_region
          %s211 = ssub.s32 2048, 2048
          %212 = vsyncadd [#allocation9], %s211
          %s213 = sshll.u32 [#allocation10], 4
          %s214 = int_to_ptr.vmem [resolvable:$true] %s213
          %219 = dma.hbm_to_vmem [thread:$0]  %s4, 2048, %s214, [#allocation9], 128, 128, 8
        $region28: #{tpu_custom_call.1} parent=11 // pred_fallthru
          _
      $region12: #{tpu_custom_call.1} parent=5 // pred_fallthru
        _
      %p220 = scmp.lt.s32.totalorder %s19, 2
      // Predicated region
      $region29: #{tpu_custom_call.1} parent=5 // pred_check
        %p221 = pneg %p220
      $region30: #{tpu_custom_call.1} parent=5 // pred_check_branch
        %223 = sbr.rel (%p221) target = $region32
      $region31: #{tpu_custom_call.1} parent=5 // pred_region
        // Predicated region
        $region33: #{tpu_custom_call.1} parent=31 // pred_check
          %p224 = pneg %p39
        $region34: #{tpu_custom_call.1} parent=31 // pred_check_branch
          %226 = sbr.rel (%p224) target = $region36
        $region35: #{tpu_custom_call.1} parent=31 // pred_region
          %s227 = sand.u32 %s29, 1
          %s228 = scalar_lea.sflag [#allocation3], %s227
          %s229 = sand.u32 %s29, 1
          %s230 = smul.addr %s229, 8
          %s231 = scalar_lea.vmem [#allocation2], %s230
          %s233 = ssub.s32 128, 128
          %234 = vsyncadd %s228, %s233
          %s235 = smul.addr %s19, 128
          %s236 = scalar_lea.hbm %s0, %s235
          %s238 = sshll.u32 %s231, 4
          %s239 = int_to_ptr.vmem [resolvable:$true] %s238
          %241 = dma.hbm_to_vmem [thread:$0]  %s236, 128, %s239, %s228
        $region36: #{tpu_custom_call.1} parent=31 // pred_fallthru
          _
      $region32: #{tpu_custom_call.1} parent=5 // pred_fallthru
        _
      %p242 = scmp.le.s32.totalorder 1, %s19
      %p243 = scmp.lt.s32.totalorder %s19, 3
      %p244 = pnand %p242, %p243
      %p245 = pneg %p244
      // Predicated region
      $region37: #{tpu_custom_call.1} parent=5 // pred_check
        _
      $region38: #{tpu_custom_call.1} parent=5 // pred_check_branch
        %247 = sbr.rel (%p244) target = $region40
      $region39: #{tpu_custom_call.1} parent=5 // pred_region
        %s248 = ssub.s32 %s19, 1
        %s249 = sand.u32 %s32, 1
        %s250 = scalar_lea.sflag [#allocation3], %s249
        %s251 = sand.u32 %s32, 1
        %s252 = smul.addr %s251, 8
        %s253 = scalar_lea.vmem [#allocation2], %s252
        // Predicated region
        $region41: #{tpu_custom_call.1} parent=39 // pred_check
          %p254 = pneg %p45
        $region42: #{tpu_custom_call.1} parent=39 // pred_check_branch
          %256 = sbr.rel (%p254) target = $region44
        $region43: #{tpu_custom_call.1} parent=39 // pred_region
          %257 = dma.done %s250, 128
        $region44: #{tpu_custom_call.1} parent=39 // pred_fallthru
          _
        // Predicated region
        $region45: #{tpu_custom_call.1} parent=39 // pred_check
          %p258 = pneg %p66
        $region46: #{tpu_custom_call.1} parent=39 // pred_check_branch
          %260 = sbr.rel (%p258) target = $region48
        $region47: #{tpu_custom_call.1} parent=39 // pred_region
          %261 = dma.done [#allocation6], 128
        $region48: #{tpu_custom_call.1} parent=39 // pred_fallthru
          _
        // Predicated region
        $region49: #{tpu_custom_call.1} parent=39 // pred_check
          %p262 = pneg %p87
        $region50: #{tpu_custom_call.1} parent=39 // pred_check_branch
          %264 = sbr.rel (%p262) target = $region52
        $region51: #{tpu_custom_call.1} parent=39 // pred_region
          %265 = dma.done [#allocation6], 2048
        $region52: #{tpu_custom_call.1} parent=39 // pred_fallthru
          _
        // Predicated region
        $region53: #{tpu_custom_call.1} parent=39 // pred_check
          %p266 = pneg %p108
        $region54: #{tpu_custom_call.1} parent=39 // pred_check_branch
          %268 = sbr.rel (%p266) target = $region56
        $region55: #{tpu_custom_call.1} parent=39 // pred_region
          %269 = dma.done [#allocation9], 2048
        $region56: #{tpu_custom_call.1} parent=39 // pred_fallthru
          _
        // Predicated region
        $region57: #{tpu_custom_call.1} parent=39 // pred_check
          %p270 = pneg %p129
        $region58: #{tpu_custom_call.1} parent=39 // pred_check_branch
          %272 = sbr.rel (%p270) target = $region60
        $region59: #{tpu_custom_call.1} parent=39 // pred_region
          %273 = dma.done [#allocation9], 2048
        $region60: #{tpu_custom_call.1} parent=39 // pred_fallthru
          _
        %s274 = sand.u32 %s32, 1
        %s275 = scalar_lea.sflag [#allocation3], %s274
        %s276 = sand.u32 %s32, 1
        %s277 = smul.addr %s276, 8
        %s278 = scalar_lea.vmem [#allocation2], %s277
        %p279 = pneg %p45
        %p280 = pneg %p42
        %p281 = pneg %p66
        %p282 = pneg %p63
        %p283 = pneg %p87
        %p284 = pneg %p84
        %p285 = pneg %p108
        %p286 = pneg %p105
        %p287 = pneg %p129
        %p288 = pneg %p126
        %p289 = pneg %p155
        %p290 = pneg %p152
        %s291 = sand.u32 %s142, 1
        %s292 = scalar_lea.sflag [#allocation4], %s291
        %s293 = sand.u32 %s142, 1
        %s294 = smul.addr %s293, 8
        %s295 = scalar_lea.vmem [#allocation11], %s294
        %v296 = vld [vmem:[%s253] sm:$0xff]
        %v297 = vld [vmem:[#allocation5] sm:$0xff]
        %v298 = vlaneseq
        %v299 = vand.u32 %v298, 127
        %vm300 = vcmp.lt.s32.totalorder %v299, 32
        %v301 = vsel %vm300, 1, 0
        %v302 = vcvt.s32.f32 %v301
        %v303 = vmul.f32 %v296, %v302
        %304 = vadd.xlane.f32.xlu0 %v303
        %v305 = vpop.xlane.xlu0 %304
        %v306 = vmul.f32 %v305, 0.03125
        %v307 = vsub.f32 %v296, %v306
        %v308 = vmul.f32 %v307, %v302
        %v309 = vmul.f32 %v308, %v308
        %310 = vadd.xlane.f32.xlu0 %v309
        %v311 = vpop.xlane.xlu0 %310
        %v312 = vmul.f32 %v311, 0.03125
        %v313 = vadd.f32 %v312, 1e-05
        %v314 = vrsqrt.pop %v313
        %v315 = vmul.f32 %v308, %v314
        %v316 = vlaneseq
        %v317 = vshrl.u32 %v316, 7
        %v318 = vsub.s32 0, %v317
        %v319 = vrot.slane %v297, %v318
        %v320 = vmul.f32 %v315, %v319
        %v321 = vlaneseq
        %v322 = vshrl.u32 %v321, 7
        %v323 = vsub.s32 1, %v322
        %v324 = vrot.slane %v297, %v323
        %v325 = vadd.f32 %v320, %v324
        %v326 = vld [vmem:[#allocation7] sm:$0xff]
        %v327 = vld [vmem:[#allocation7 + $0x8] sm:$0xff]
        %v328 = vld [vmem:[#allocation7 + $0x10] sm:$0xff]
        %v329 = vld [vmem:[#allocation7 + $0x18] sm:$0xff]
        %v330 = vld [vmem:[#allocation7 + $0x20] sm:$0xff]
        %v331 = vld [vmem:[#allocation7 + $0x28] sm:$0xff]
        %v332 = vld [vmem:[#allocation7 + $0x30] sm:$0xff]
        %v333 = vld [vmem:[#allocation7 + $0x38] sm:$0xff]
        %v334 = vld [vmem:[#allocation7 + $0x40] sm:$0xff]
        %v335 = vld [vmem:[#allocation7 + $0x48] sm:$0xff]
        %v336 = vld [vmem:[#allocation7 + $0x50] sm:$0xff]
        %v337 = vld [vmem:[#allocation7 + $0x58] sm:$0xff]
        %v338 = vld [vmem:[#allocation7 + $0x60] sm:$0xff]
        %v339 = vld [vmem:[#allocation7 + $0x68] sm:$0xff]
        %v340 = vld [vmem:[#allocation7 + $0x70] sm:$0xff]
        %v341 = vld [vmem:[#allocation7 + $0x78] sm:$0xff]
        %v342 = vlaneseq
        %v343 = vshrl.u32 %v342, 7
        %v344 = vsub.s32 2, %v343
        %v345 = vrot.slane %v297, %v344
        %346 = vmatprep.subr.mxu0 0.0
        %347 = vmatpush1.msra.mxu0 %v341
        %348 = vmatprep.subr.mxu0 0.0
        %349 = vmatpush1.msra.mxu0 %v340
        %350 = vmatprep.subr.mxu0 0.0
        %351 = vmatpush1.msra.mxu0 %v339
        %352 = vmatprep.subr.mxu0 0.0
        %353 = vmatpush1.msra.mxu0 %v338
        %354 = vmatprep.subr.mxu0 0.0
        %355 = vmatpush1.msra.mxu0 %v337
        %356 = vmatprep.subr.mxu0 0.0
        %357 = vmatpush1.msra.mxu0 %v336
        %358 = vmatprep.subr.mxu0 0.0
        %359 = vmatpush1.msra.mxu0 %v335
        %360 = vmatprep.subr.mxu0 0.0
        %361 = vmatpush1.msra.mxu0 %v334
        %362 = vmatprep.subr.mxu0 0.0
        %363 = vmatpush1.msra.mxu0 %v333
        %364 = vmatprep.subr.mxu0 0.0
        %365 = vmatpush1.msra.mxu0 %v332
        %366 = vmatprep.subr.mxu0 0.0
        %367 = vmatpush1.msra.mxu0 %v331
        %368 = vmatprep.subr.mxu0 0.0
        %369 = vmatpush1.msra.mxu0 %v330
        %370 = vmatprep.subr.mxu0 0.0
        %371 = vmatpush1.msra.mxu0 %v329
        %372 = vmatprep.subr.mxu0 0.0
        %373 = vmatpush1.msra.mxu0 %v328
        %374 = vmatprep.subr.mxu0 0.0
        %375 = vmatpush1.msra.mxu0 %v327
        %376 = vmatprep.subr.mxu0 0.0
        %377 = vmatpush1.msra.mxu0 %v326
        %378 = vmatprep.subr.mxu0 0.0
        %379 = vmatpush2.msra.mxu0 0.0
        %380 = vmatprep.subr.mxu0 0.0
        %381 = vmatpush2.msra.mxu0 0.0
        %382 = vmatprep.subr.mxu0 0.0
        %383 = vmatpush2.msra.mxu0 0.0
        %384 = vmatprep.subr.mxu0 0.0
        %385 = vmatpush2.msra.mxu0 0.0
        %386 = vmatprep.subr.mxu0 0.0
        %387 = vmatpush2.msra.mxu0 0.0
        %388 = vmatprep.subr.mxu0 0.0
        %389 = vmatpush2.msra.mxu0 0.0
        %390 = vmatprep.subr.mxu0 0.0
        %391 = vmatpush2.msra.mxu0 0.0
        %392 = vmatprep.subr.mxu0 0.0
        %393 = vmatpush2.msra.mxu0 0.0
        %394 = vmatprep.subr.mxu0 0.0
        %395 = vmatpush2.msra.mxu0 0.0
        %396 = vmatprep.subr.mxu0 0.0
        %397 = vmatpush2.msra.mxu0 0.0
        %398 = vmatprep.subr.mxu0 0.0
        %399 = vmatpush2.msra.mxu0 0.0
        %400 = vmatprep.subr.mxu0 0.0
        %401 = vmatpush2.msra.mxu0 0.0
        %402 = vmatprep.subr.mxu0 0.0
        %403 = vmatpush2.msra.mxu0 0.0
        %404 = vmatprep.subr.mxu0 0.0
        %405 = vmatpush2.msra.mxu0 0.0
        %406 = vmatprep.subr.mxu0 0.0
        %407 = vmatpush2.msra.mxu0 0.0
        %408 = vmatprep.subr.mxu0 0.0
        %409 = vmatpush2.msra.mxu0 0.0
        %410 = vmatprep.mubr.f32.mxu0 0.0
        %411 = vmatmul.mubr.f32.gmra.mxu0 %v325
        %v412 = vpop.f32.mrf.mxu0
        %v413 = vadd.f32 %v345, %v412
        %v414 = vpop.f32.mrf.mxu0
        %415 = vdwg.mxu0
        %v416 = vmax.f32 %v413, 0.0
        %v417 = vld [vmem:[#allocation8] sm:$0xff]
        %v418 = vld [vmem:[#allocation8 + $0x8] sm:$0xff]
        %v419 = vld [vmem:[#allocation8 + $0x10] sm:$0xff]
        %v420 = vld [vmem:[#allocation8 + $0x18] sm:$0xff]
        %v421 = vld [vmem:[#allocation8 + $0x20] sm:$0xff]
        %v422 = vld [vmem:[#allocation8 + $0x28] sm:$0xff]
        %v423 = vld [vmem:[#allocation8 + $0x30] sm:$0xff]
        %v424 = vld [vmem:[#allocation8 + $0x38] sm:$0xff]
        %v425 = vld [vmem:[#allocation8 + $0x40] sm:$0xff]
        %v426 = vld [vmem:[#allocation8 + $0x48] sm:$0xff]
        %v427 = vld [vmem:[#allocation8 + $0x50] sm:$0xff]
        %v428 = vld [vmem:[#allocation8 + $0x58] sm:$0xff]
        %v429 = vld [vmem:[#allocation8 + $0x60] sm:$0xff]
        %v430 = vld [vmem:[#allocation8 + $0x68] sm:$0xff]
        %v431 = vld [vmem:[#allocation8 + $0x70] sm:$0xff]
        %v432 = vld [vmem:[#allocation8 + $0x78] sm:$0xff]
        %v433 = vlaneseq
        %v434 = vshrl.u32 %v433, 7
        %v435 = vsub.s32 3, %v434
        %v436 = vrot.slane %v297, %v435
        %437 = vmatprep.subr.mxu0 0.0
        %438 = vmatpush1.msra.mxu0 %v432
        %439 = vmatprep.subr.mxu0 0.0
        %440 = vmatpush1.msra.mxu0 %v431
        %441 = vmatprep.subr.mxu0 0.0
        %442 = vmatpush1.msra.mxu0 %v430
        %443 = vmatprep.subr.mxu0 0.0
        %444 = vmatpush1.msra.mxu0 %v429
        %445 = vmatprep.subr.mxu0 0.0
        %446 = vmatpush1.msra.mxu0 %v428
        %447 = vmatprep.subr.mxu0 0.0
        %448 = vmatpush1.msra.mxu0 %v427
        %449 = vmatprep.subr.mxu0 0.0
        %450 = vmatpush1.msra.mxu0 %v426
        %451 = vmatprep.subr.mxu0 0.0
        %452 = vmatpush1.msra.mxu0 %v425
        %453 = vmatprep.subr.mxu0 0.0
        %454 = vmatpush1.msra.mxu0 %v424
        %455 = vmatprep.subr.mxu0 0.0
        %456 = vmatpush1.msra.mxu0 %v423
        %457 = vmatprep.subr.mxu0 0.0
        %458 = vmatpush1.msra.mxu0 %v422
        %459 = vmatprep.subr.mxu0 0.0
        %460 = vmatpush1.msra.mxu0 %v421
        %461 = vmatprep.subr.mxu0 0.0
        %462 = vmatpush1.msra.mxu0 %v420
        %463 = vmatprep.subr.mxu0 0.0
        %464 = vmatpush1.msra.mxu0 %v419
        %465 = vmatprep.subr.mxu0 0.0
        %466 = vmatpush1.msra.mxu0 %v418
        %467 = vmatprep.subr.mxu0 0.0
        %468 = vmatpush1.msra.mxu0 %v417
        %469 = vmatprep.subr.mxu0 0.0
        %470 = vmatpush2.msra.mxu0 0.0
        %471 = vmatprep.subr.mxu0 0.0
        %472 = vmatpush2.msra.mxu0 0.0
        %473 = vmatprep.subr.mxu0 0.0
        %474 = vmatpush2.msra.mxu0 0.0
        %475 = vmatprep.subr.mxu0 0.0
        %476 = vmatpush2.msra.mxu0 0.0
        %477 = vmatprep.subr.mxu0 0.0
        %478 = vmatpush2.msra.mxu0 0.0
        %479 = vmatprep.subr.mxu0 0.0
        %480 = vmatpush2.msra.mxu0 0.0
        %481 = vmatprep.subr.mxu0 0.0
        %482 = vmatpush2.msra.mxu0 0.0
        %483 = vmatprep.subr.mxu0 0.0
        %484 = vmatpush2.msra.mxu0 0.0
        %485 = vmatprep.subr.mxu0 0.0
        %486 = vmatpush2.msra.mxu0 0.0
        %487 = vmatprep.subr.mxu0 0.0
        %488 = vmatpush2.msra.mxu0 0.0
        %489 = vmatprep.subr.mxu0 0.0
        %490 = vmatpush2.msra.mxu0 0.0
        %491 = vmatprep.subr.mxu0 0.0
        %492 = vmatpush2.msra.mxu0 0.0
        %493 = vmatprep.subr.mxu0 0.0
        %494 = vmatpush2.msra.mxu0 0.0
        %495 = vmatprep.subr.mxu0 0.0
        %496 = vmatpush2.msra.mxu0 0.0
        %497 = vmatprep.subr.mxu0 0.0
        %498 = vmatpush2.msra.mxu0 0.0
        %499 = vmatprep.subr.mxu0 0.0
        %500 = vmatpush2.msra.mxu0 0.0
        %501 = vmatprep.mubr.f32.mxu0 0.0
        %502 = vmatmul.mubr.f32.gmra.mxu0 %v416
        %v503 = vpop.f32.mrf.mxu0
        %v504 = vadd.f32 %v436, %v503
        %v505 = vpop.f32.mrf.mxu0
        %506 = vdwg.mxu0
        %v507 = vmax.f32 %v504, 0.0
        %v508 = vld [vmem:[#allocation10] sm:$0xff]
        %v509 = vld [vmem:[#allocation10 + $0x8] sm:$0xff]
        %v510 = vld [vmem:[#allocation10 + $0x10] sm:$0xff]
        %v511 = vld [vmem:[#allocation10 + $0x18] sm:$0xff]
        %v512 = vld [vmem:[#allocation10 + $0x20] sm:$0xff]
        %v513 = vld [vmem:[#allocation10 + $0x28] sm:$0xff]
        %v514 = vld [vmem:[#allocation10 + $0x30] sm:$0xff]
        %v515 = vld [vmem:[#allocation10 + $0x38] sm:$0xff]
        %v516 = vld [vmem:[#allocation10 + $0x40] sm:$0xff]
        %v517 = vld [vmem:[#allocation10 + $0x48] sm:$0xff]
        %v518 = vld [vmem:[#allocation10 + $0x50] sm:$0xff]
        %v519 = vld [vmem:[#allocation10 + $0x58] sm:$0xff]
        %v520 = vld [vmem:[#allocation10 + $0x60] sm:$0xff]
        %v521 = vld [vmem:[#allocation10 + $0x68] sm:$0xff]
        %v522 = vld [vmem:[#allocation10 + $0x70] sm:$0xff]
        %v523 = vld [vmem:[#allocation10 + $0x78] sm:$0xff]
        %v524 = vlaneseq
        %v525 = vshrl.u32 %v524, 7
        %v526 = vsub.s32 4, %v525
        %v527 = vrot.slane %v297, %v526
        %528 = vmatprep.subr.mxu0 0.0
        %529 = vmatpush1.msra.mxu0 %v523
        %530 = vmatprep.subr.mxu0 0.0
        %531 = vmatpush1.msra.mxu0 %v522
        %532 = vmatprep.subr.mxu0 0.0
        %533 = vmatpush1.msra.mxu0 %v521
        %534 = vmatprep.subr.mxu0 0.0
        %535 = vmatpush1.msra.mxu0 %v520
        %536 = vmatprep.subr.mxu0 0.0
        %537 = vmatpush1.msra.mxu0 %v519
        %538 = vmatprep.subr.mxu0 0.0
        %539 = vmatpush1.msra.mxu0 %v518
        %540 = vmatprep.subr.mxu0 0.0
        %541 = vmatpush1.msra.mxu0 %v517
        %542 = vmatprep.subr.mxu0 0.0
        %543 = vmatpush1.msra.mxu0 %v516
        %544 = vmatprep.subr.mxu0 0.0
        %545 = vmatpush1.msra.mxu0 %v515
        %546 = vmatprep.subr.mxu0 0.0
        %547 = vmatpush1.msra.mxu0 %v514
        %548 = vmatprep.subr.mxu0 0.0
        %549 = vmatpush1.msra.mxu0 %v513
        %550 = vmatprep.subr.mxu0 0.0
        %551 = vmatpush1.msra.mxu0 %v512
        %552 = vmatprep.subr.mxu0 0.0
        %553 = vmatpush1.msra.mxu0 %v511
        %554 = vmatprep.subr.mxu0 0.0
        %555 = vmatpush1.msra.mxu0 %v510
        %556 = vmatprep.subr.mxu0 0.0
        %557 = vmatpush1.msra.mxu0 %v509
        %558 = vmatprep.subr.mxu0 0.0
        %559 = vmatpush1.msra.mxu0 %v508
        %560 = vmatprep.subr.mxu0 0.0
        %561 = vmatpush2.msra.mxu0 0.0
        %562 = vmatprep.subr.mxu0 0.0
        %563 = vmatpush2.msra.mxu0 0.0
        %564 = vmatprep.subr.mxu0 0.0
        %565 = vmatpush2.msra.mxu0 0.0
        %566 = vmatprep.subr.mxu0 0.0
        %567 = vmatpush2.msra.mxu0 0.0
        %568 = vmatprep.subr.mxu0 0.0
        %569 = vmatpush2.msra.mxu0 0.0
        %570 = vmatprep.subr.mxu0 0.0
        %571 = vmatpush2.msra.mxu0 0.0
        %572 = vmatprep.subr.mxu0 0.0
        %573 = vmatpush2.msra.mxu0 0.0
        %574 = vmatprep.subr.mxu0 0.0
        %575 = vmatpush2.msra.mxu0 0.0
        %576 = vmatprep.subr.mxu0 0.0
        %577 = vmatpush2.msra.mxu0 0.0
        %578 = vmatprep.subr.mxu0 0.0
        %579 = vmatpush2.msra.mxu0 0.0
        %580 = vmatprep.subr.mxu0 0.0
        %581 = vmatpush2.msra.mxu0 0.0
        %582 = vmatprep.subr.mxu0 0.0
        %583 = vmatpush2.msra.mxu0 0.0
        %584 = vmatprep.subr.mxu0 0.0
        %585 = vmatpush2.msra.mxu0 0.0
        %586 = vmatprep.subr.mxu0 0.0
        %587 = vmatpush2.msra.mxu0 0.0
        %588 = vmatprep.subr.mxu0 0.0
        %589 = vmatpush2.msra.mxu0 0.0
        %590 = vmatprep.subr.mxu0 0.0
        %591 = vmatpush2.msra.mxu0 0.0
        %592 = vmatprep.mubr.f32.mxu0 0.0
        %593 = vmatmul.mubr.f32.gmra.mxu0 %v507
        %v594 = vpop.f32.mrf.mxu0
        %v595 = vadd.f32 %v527, %v594
        %v596 = vpop.f32.mrf.mxu0
        %597 = vdwg.mxu0
        %v598 = vadd.f32 %v296, %v595
        %v599 = vmul.f32 %v598, %v302
        %600 = vadd.xlane.f32.xlu0 %v599
        %v601 = vpop.xlane.xlu0 %600
        %v602 = vmul.f32 %v601, 0.03125
        %v603 = vsub.f32 %v598, %v602
        %v604 = vmul.f32 %v603, %v302
        %v605 = vmul.f32 %v604, %v604
        %606 = vadd.xlane.f32.xlu0 %v605
        %v607 = vpop.xlane.xlu0 %606
        %v608 = vmul.f32 %v607, 0.03125
        %v609 = vadd.f32 %v608, 1e-05
        %v610 = vrsqrt.pop %v609
        %v611 = vmul.f32 %v604, %v610
        %v612 = vlaneseq
        %v613 = vshrl.u32 %v612, 7
        %v614 = vsub.s32 5, %v613
        %v615 = vrot.slane %v297, %v614
        %v616 = vmul.f32 %v611, %v615
        %v617 = vlaneseq
        %v618 = vshrl.u32 %v617, 7
        %v619 = vsub.s32 6, %v618
        %v620 = vrot.slane %v297, %v619
        %v621 = vadd.f32 %v616, %v620
        %622 = vst [vmem:[%s295] sm:$0xff] %v621
        %s623 = sand.u32 %s142, 1
        %s624 = scalar_lea.sflag [#allocation4], %s623
        %s625 = sand.u32 %s142, 1
        %s626 = smul.addr %s625, 8
        %s627 = scalar_lea.vmem [#allocation11], %s626
        // Predicated region
        $region61: #{tpu_custom_call.1} parent=39 // pred_check
          %p628 = pneg %p152
        $region62: #{tpu_custom_call.1} parent=39 // pred_check_branch
          %630 = sbr.rel (%p628) target = $region64
        $region63: #{tpu_custom_call.1} parent=39 // pred_region
          %s632 = ssub.s32 128, 128
          %633 = vsyncadd %s624, %s632
          %s634 = smul.addr %s24, 128
          %s635 = scalar_lea.hbm %s5, %s634
          %s637 = sshll.u32 %s627, 4
          %s638 = int_to_ptr.vmem [resolvable:$true] %s637
          %640 = dma.vmem_to_hbm [thread:$0]  %s638, 128, %s635, %s624
        $region64: #{tpu_custom_call.1} parent=39 // pred_fallthru
          _
      $region40: #{tpu_custom_call.1} parent=5 // pred_fallthru
        _
      %p641 = scmp.le.s32.totalorder 2, %s19
      // Predicated region
      $region65: #{tpu_custom_call.1} parent=5 // pred_check
        %p642 = pneg %p641
      $region66: #{tpu_custom_call.1} parent=5 // pred_check_branch
        %644 = sbr.rel (%p642) target = $region68
      $region67: #{tpu_custom_call.1} parent=5 // pred_region
        %s645 = ssub.s32 %s19, 2
        // Predicated region
        $region69: #{tpu_custom_call.1} parent=67 // pred_check
          %p646 = pneg %p158
        $region70: #{tpu_custom_call.1} parent=67 // pred_check_branch
          %648 = sbr.rel (%p646) target = $region72
        $region71: #{tpu_custom_call.1} parent=67 // pred_region
          %s649 = sand.u32 %s143, 1
          %s650 = scalar_lea.sflag [#allocation4], %s649
          %s651 = sand.u32 %s143, 1
          %s652 = smul.addr %s651, 8
          %s653 = scalar_lea.vmem [#allocation11], %s652
          %654 = dma.done %s650, 128
        $region72: #{tpu_custom_call.1} parent=67 // pred_fallthru
          _
      $region68: #{tpu_custom_call.1} parent=5 // pred_fallthru
        _
    $region6: #{tpu_custom_call.1} parent=1 // loop_footer
      %s23 = sadd.s32 1, %s19
    $region7: #{tpu_custom_call.1} parent=1 // loop_footer_branch
      %18 = sbr.rel target = $region3
    $region8: #{tpu_custom_call.1} parent=1 // loop_exit
      _
    %655 = vsyncpa [#allocation3], 1
    %s656 = scalar_lea.sflag [#allocation3], 1
    %657 = vsyncpa %s656, 1
    %658 = vsyncpa [#allocation6], 1
    %659 = vsyncpa [#allocation9], 1
    %660 = vsyncpa [#allocation4], 1
    %s661 = scalar_lea.sflag [#allocation4], 1
    %662 = vsyncpa %s661, 1

</llo_original>
